<compile_context>
chip_gen: v5e
topology: v5e:2x2
jax: 0.10.0
libtpu: 0.0.40
codegen_flags: <defaults>
</compile_context>

<pallas_src>
import math

import jax
import jax.numpy as jnp
from jax import lax
from jax.experimental import pallas as pl
from jax.experimental.pallas import tpu as pltpu

# ------------------------------ config --------------------------------------
VOCAB = 64
MAX_POS = 16
TYPE_VOCAB = 2
HIDDEN = 32            # stands in for 768  (lane-sparse only at this toy size)
NUM_LAYERS = 2         # stands in for 12
NUM_HEADS = 4          # stands in for 12
HEAD_DIM = HIDDEN // NUM_HEADS
INTERMEDIATE = 64      # stands in for 3072
NUM_CLASSES = 2        # class_size
CLS_PAD = 128          # classifier output padded to a full lane width
LN_EPS = 1e-12

BATCH = 2
SEQ = 8                # BATCH*SEQ = 16 rows -> multiple of 16 (bf16 sublane packing)

MATMUL_DTYPE = jnp.bfloat16    # MXU operand dtype; accumulation is always f32


# ------------------------------ in-kernel helpers ----------------------------
def _layernorm(x, g, b):
    mu = jnp.mean(x, axis=-1, keepdims=True)
    var = jnp.mean(jnp.square(x - mu), axis=-1, keepdims=True)
    return (x - mu) * lax.rsqrt(var + LN_EPS) * g + b


def _gelu(x):
    # TODO(synk): HF BERT uses the erf-form GELU; tanh approximation differs ~1e-3.
    c = math.sqrt(2.0 / math.pi)
    return 0.5 * x * (1.0 + jnp.tanh(c * (x + 0.044715 * x * x * x)))


# ------------------------------ fused BERT kernel ----------------------------
def _bert_kernel(emb_ref, mask_ref, embg_ref, embb_ref,
                 wqkv_ref, bqkv_ref, wo_ref, bo_ref, ln1g_ref, ln1b_ref,
                 wi_ref, bi_ref, wf_ref, bf_ref, ln2g_ref, ln2b_ref,
                 poolw_ref, poolb_ref, clsw_ref, clsb_ref,
                 h_ref, logits_ref):
    """One grid step = one encoder layer over the WHOLE batch.

    Grid = (NUM_LAYERS,), 'arbitrary'.  Both output blocks use a constant index
    map, so the (BATCH*SEQ, HIDDEN) activation slab and the (BATCH, CLS_PAD)
    logits block stay resident in VMEM for the whole layer stack.  Per-layer
    weights are selected via index_map -> each layer's weights are DMAed once.
    """
    layer = pl.program_id(0)

    # Layer 0: embedding LayerNorm initializes the resident activation slab.
    @pl.when(layer == 0)
    def _():
        h_ref[...] = _layernorm(emb_ref[...], embg_ref[...], embb_ref[...])
        logits_ref[...] = jnp.zeros_like(logits_ref)

    h = h_ref[...]                                   # (B*S, H) f32
    hb = h.astype(MATMUL_DTYPE)

    # Fused QKV projection: one (B*S, H) @ (H, 3H) MXU matmul, f32 accumulation.
    # 1/sqrt(head_dim) is pre-folded into the Q weights at init.
    qkv = jnp.dot(hb, wqkv_ref[...], preferred_element_type=jnp.float32)
    qkv = qkv + bqkv_ref[...]                        # (B*S, 3H) f32

    mask = mask_ref[...]                             # (B, 1, S) additive key mask

    # Attention: heads batched in a single einsum per batch element; the output
    # projection is ONE concatenated (B*S, H) @ (H, H) matmul afterwards.
    ctx_rows = []
    for b in range(BATCH):                           # static unroll (toy B=2)
        x = qkv[b * SEQ:(b + 1) * SEQ, :]            # (S, 3H) f32
        q = jnp.stack([x[:, hh * HEAD_DIM:(hh + 1) * HEAD_DIM]
                       for hh in range(NUM_HEADS)], axis=0)                    # (NH,S,HD)
        k = jnp.stack([x[:, HIDDEN + hh * HEAD_DIM:HIDDEN + (hh + 1) * HEAD_DIM]
                       for hh in range(NUM_HEADS)], axis=0)
        v = jnp.stack([x[:, 2 * HIDDEN + hh * HEAD_DIM:2 * HIDDEN + (hh + 1) * HEAD_DIM]
                       for hh in range(NUM_HEADS)], axis=0)

        s = jnp.einsum('hqd,hkd->hqk',
                       q.astype(MATMUL_DTYPE), k.astype(MATMUL_DTYPE),
                       preferred_element_type=jnp.float32)                     # (NH,S,S)
        s = s + mask[b]                              # key mask, applied once (broadcast)
        s = s - jnp.max(s, axis=-1, keepdims=True)
        p = jnp.exp(s)
        p = p * pl.reciprocal(jnp.sum(p, axis=-1, keepdims=True), approx=True)
        c = jnp.einsum('hqk,hkd->hqd',
                       p.astype(MATMUL_DTYPE), v.astype(MATMUL_DTYPE),
                       preferred_element_type=jnp.float32)                     # (NH,S,HD)
        ctx_rows.append(jnp.concatenate([c[hh] for hh in range(NUM_HEADS)], axis=-1))
    ctx = jnp.concatenate(ctx_rows, axis=0)          # (B*S, H) f32

    attn = jnp.dot(ctx.astype(MATMUL_DTYPE), wo_ref[...],
                   preferred_element_type=jnp.float32) + bo_ref[...]

    # residual + LayerNorm 1 (f32)
    h1 = _layernorm(attn + h, ln1g_ref[...], ln1b_ref[...])

    # FFN: (B*S,H)@(H,I) -> GELU -> (B*S,I)@(I,H)
    inter = jnp.dot(h1.astype(MATMUL_DTYPE), wi_ref[...],
                    preferred_element_type=jnp.float32) + bi_ref[...]
    inter = _gelu(inter)
    ffn = jnp.dot(inter.astype(MATMUL_DTYPE), wf_ref[...],
                  preferred_element_type=jnp.float32) + bf_ref[...]

    # residual + LayerNorm 2 -> resident activation for the next layer
    h_new = _layernorm(ffn + h1, ln2g_ref[...], ln2b_ref[...])
    h_ref[...] = h_new

    # Last layer: fused pooler + classifier straight from the resident slab.
    @pl.when(layer == NUM_LAYERS - 1)
    def _():
        cls = jnp.concatenate([h_new[b * SEQ:b * SEQ + 1, :]
                               for b in range(BATCH)], axis=0)   # (B, H) [CLS] rows
        pooled = jnp.tanh(jnp.dot(cls.astype(MATMUL_DTYPE), poolw_ref[...],
                                  preferred_element_type=jnp.float32) + poolb_ref[...])
        logits_ref[...] = jnp.dot(pooled.astype(MATMUL_DTYPE), clsw_ref[...],
                                  preferred_element_type=jnp.float32) + clsb_ref[...]


def pallas_bert_model(emb2d, mask3, params):
    H = HIDDEN
    BS = BATCH * SEQ
    const2 = lambda l: (0, 0)
    perlayer = lambda l: (l, 0, 0)
    in_specs = [
        pl.BlockSpec((BS, H), const2),                            # emb (B*S, H)
        pl.BlockSpec((BATCH, 1, SEQ), lambda l: (0, 0, 0)),       # mask (B, 1, S)
        pl.BlockSpec((1, H), const2),                             # emb_ln_g
        pl.BlockSpec((1, H), const2),                             # emb_ln_b
        pl.BlockSpec((None, H, 3 * H), perlayer),                 # wqkv (L,H,3H)
        pl.BlockSpec((None, 1, 3 * H), perlayer),                 # bqkv
        pl.BlockSpec((None, H, H), perlayer),                     # wo
        pl.BlockSpec((None, 1, H), perlayer),                     # bo
        pl.BlockSpec((None, 1, H), perlayer),                     # ln1_g
        pl.BlockSpec((None, 1, H), perlayer),                     # ln1_b
        pl.BlockSpec((None, H, INTERMEDIATE), perlayer),          # wi
        pl.BlockSpec((None, 1, INTERMEDIATE), perlayer),          # bi
        pl.BlockSpec((None, INTERMEDIATE, H), perlayer),          # wf
        pl.BlockSpec((None, 1, H), perlayer),                     # bf
        pl.BlockSpec((None, 1, H), perlayer),                     # ln2_g
        pl.BlockSpec((None, 1, H), perlayer),                     # ln2_b
        pl.BlockSpec((H, H), const2),                             # pool_w
        pl.BlockSpec((1, H), const2),                             # pool_b
        pl.BlockSpec((H, CLS_PAD), const2),                       # cls_w_pad
        pl.BlockSpec((1, CLS_PAD), const2),                       # cls_b_pad
    ]
    out_shape = (jax.ShapeDtypeStruct((BS, H), jnp.float32),       # final hidden states
                 jax.ShapeDtypeStruct((BATCH, CLS_PAD), jnp.float32))  # lane-dense logits
    out_specs = (pl.BlockSpec((BS, H), const2),
                 pl.BlockSpec((BATCH, CLS_PAD), const2))
    # TODO(synk): at real BERT-base scale on v7x (64 MiB VMEM), add a K-tiling
    # grid axis over INTERMEDIATE for wi/wf instead of single-buffering weights,
    # and optionally a leading size-2 "parallel" batch-half axis for the 2 TCs.
    return pl.pallas_call(
        _bert_kernel,
        out_shape=out_shape,
        grid=(NUM_LAYERS,),
        in_specs=in_specs,
        out_specs=out_specs,
        compiler_params=pltpu.CompilerParams(
            dimension_semantics=("arbitrary",),
            vmem_limit_bytes=64 * 1024 * 1024),
    )(emb2d, mask3, params["emb_ln_g"], params["emb_ln_b"],
      params["wqkv"], params["bqkv"], params["wo"], params["bo"],
      params["ln1_g"], params["ln1_b"], params["wi"], params["bi"],
      params["wf"], params["bf"], params["ln2_g"], params["ln2_b"],
      params["pool_w"], params["pool_b"], params["cls_w_pad"], params["cls_b_pad"])


# ------------------------------ model ----------------------------------------
def bert_sst2_forward(params, input_ids, token_type_ids, attention_mask):
    B, S = input_ids.shape
    positions = jnp.arange(S)[None, :]
    # embedding gathers are glue (table lookups), done in plain JAX
    emb = (params["word_emb"][input_ids]
           + params["pos_emb"][positions]
           + params["type_emb"][token_type_ids])
    emb2d = emb.reshape(B * S, HIDDEN).astype(jnp.float32)

    # BERT extended attention mask: (1 - mask) * -large, broadcast over queries
    mask3 = ((1.0 - attention_mask.astype(jnp.float32)) * -1e9).reshape(B, 1, S)

    # single fused pallas_call: embedding LN + all layers + pooler + classifier
    _, logits_pad = pallas_bert_model(emb2d, mask3, params)
    return logits_pad[:, :NUM_CLASSES]


# ------------------------------ params ---------------------------------------
def init_params(key):
    def nrm(k, shape):
        return (0.02 * jax.random.normal(k, shape)).astype(jnp.float32)

    keys = jax.random.split(key, 6 + NUM_LAYERS)
    params = {
        "word_emb": nrm(keys[0], (VOCAB, HIDDEN)),
        "pos_emb": nrm(keys[1], (MAX_POS, HIDDEN)),
        "type_emb": nrm(keys[2], (TYPE_VOCAB, HIDDEN)),
        "emb_ln_g": jnp.ones((1, HIDDEN), jnp.float32),
        "emb_ln_b": jnp.zeros((1, HIDDEN), jnp.float32),
        "pool_w": nrm(keys[3], (HIDDEN, HIDDEN)).astype(MATMUL_DTYPE),
        "pool_b": jnp.zeros((1, HIDDEN), jnp.float32),
    }
    # classifier padded to 128 lanes for unmasked (lane-dense) stores
    cls_w = nrm(keys[4], (HIDDEN, NUM_CLASSES))
    params["cls_w_pad"] = (jnp.zeros((HIDDEN, CLS_PAD), jnp.float32)
                           .at[:, :NUM_CLASSES].set(cls_w)).astype(MATMUL_DTYPE)
    params["cls_b_pad"] = jnp.zeros((1, CLS_PAD), jnp.float32)

    # stacked per-layer weights (leading layer axis, selected via index_map)
    scale = 1.0 / math.sqrt(HEAD_DIM)   # folded into the Q projection weights
    wqkv, wo, wi, wf = [], [], [], []
    for l in range(NUM_LAYERS):
        lk = jax.random.split(keys[5 + l], 6)
        wq = nrm(lk[0], (HIDDEN, HIDDEN)) * scale   # scale folded here (Q bias is zero)
        wk = nrm(lk[1], (HIDDEN, HIDDEN))
        wv = nrm(lk[2], (HIDDEN, HIDDEN))
        wqkv.append(jnp.concatenate([wq, wk, wv], axis=1))     # fused QKV weight
        wo.append(nrm(lk[3], (HIDDEN, HIDDEN)))
        wi.append(nrm(lk[4], (HIDDEN, INTERMEDIATE)))
        wf.append(nrm(lk[5], (INTERMEDIATE, HIDDEN)))
    params["wqkv"] = jnp.stack(wqkv).astype(MATMUL_DTYPE)                      # (L, H, 3H)
    params["bqkv"] = jnp.zeros((NUM_LAYERS, 1, 3 * HIDDEN), jnp.float32)
    params["wo"] = jnp.stack(wo).astype(MATMUL_DTYPE)                          # (L, H, H)
    params["bo"] = jnp.zeros((NUM_LAYERS, 1, HIDDEN), jnp.float32)
    params["ln1_g"] = jnp.ones((NUM_LAYERS, 1, HIDDEN), jnp.float32)
    params["ln1_b"] = jnp.zeros((NUM_LAYERS, 1, HIDDEN), jnp.float32)
    params["wi"] = jnp.stack(wi).astype(MATMUL_DTYPE)                          # (L, H, I)
    params["bi"] = jnp.zeros((NUM_LAYERS, 1, INTERMEDIATE), jnp.float32)
    params["wf"] = jnp.stack(wf).astype(MATMUL_DTYPE)                          # (L, I, H)
    params["bf"] = jnp.zeros((NUM_LAYERS, 1, HIDDEN), jnp.float32)
    params["ln2_g"] = jnp.ones((NUM_LAYERS, 1, HIDDEN), jnp.float32)
    params["ln2_b"] = jnp.zeros((NUM_LAYERS, 1, HIDDEN), jnp.float32)
    return params


# ------------------------------ main ------------------------------------------
if __name__ == "__main__":
    root = jax.random.PRNGKey(0)
    kp, kid = jax.random.split(root, 2)

    params = init_params(kp)

    input_ids = jax.random.randint(kid, (BATCH, SEQ), 0, VOCAB, dtype=jnp.int32)
    token_type_ids = jnp.zeros((BATCH, SEQ), dtype=jnp.int32)
    attention_mask = jnp.ones((BATCH, SEQ), dtype=jnp.int32)
    attention_mask = attention_mask.at[1, 6:].set(0)   # pad tail of example 1

    fwd = jax.jit(bert_sst2_forward)
    logits = fwd(params, input_ids, token_type_ids, attention_mask)
    jax.block_until_ready(logits)

    assert logits.shape == (BATCH, NUM_CLASSES), logits.shape
    # TODO(synk): dropout layers are identity in eval mode; not implemented.
    print("KERNEL_OK")
</pallas_src>

<mosaic_0001>
module attributes {stable_mosaic.version = 11 : i64} {
  func.func @_bert_kernel(%arg0: i32, %arg1: memref<16x32xf32, #tpu.memory_space<vmem>>, %arg2: memref<2x1x8xf32, #tpu.memory_space<vmem>>, %arg3: memref<1x32xf32, #tpu.memory_space<vmem>>, %arg4: memref<1x32xf32, #tpu.memory_space<vmem>>, %arg5: memref<1x32x96xbf16, #tpu.memory_space<vmem>>, %arg6: memref<1x1x96xf32, #tpu.memory_space<vmem>>, %arg7: memref<1x32x32xbf16, #tpu.memory_space<vmem>>, %arg8: memref<1x1x32xf32, #tpu.memory_space<vmem>>, %arg9: memref<1x1x32xf32, #tpu.memory_space<vmem>>, %arg10: memref<1x1x32xf32, #tpu.memory_space<vmem>>, %arg11: memref<1x32x64xbf16, #tpu.memory_space<vmem>>, %arg12: memref<1x1x64xf32, #tpu.memory_space<vmem>>, %arg13: memref<1x64x32xbf16, #tpu.memory_space<vmem>>, %arg14: memref<1x1x32xf32, #tpu.memory_space<vmem>>, %arg15: memref<1x1x32xf32, #tpu.memory_space<vmem>>, %arg16: memref<1x1x32xf32, #tpu.memory_space<vmem>>, %arg17: memref<32x32xbf16, #tpu.memory_space<vmem>>, %arg18: memref<1x32xf32, #tpu.memory_space<vmem>>, %arg19: memref<32x128xbf16, #tpu.memory_space<vmem>>, %arg20: memref<1x128xf32, #tpu.memory_space<vmem>>, %arg21: memref<16x32xf32, #tpu.memory_space<vmem>>, %arg22: memref<2x128xf32, #tpu.memory_space<vmem>>) attributes {dimension_semantics = [#tpu.dimension_semantics<arbitrary>], iteration_bounds = array<i64: 2>, scalar_prefetch = 0 : i64, scratch_operands = 0 : i64, tpu.core_type = #tpu.core_type<tc>, window_params = [{pipeline_mode = #tpu.pipeline_mode<synchronous>, transform_indices = @transform_0, window_bounds = array<i64: 16, 32>}, {pipeline_mode = #tpu.pipeline_mode<synchronous>, transform_indices = @transform_1, window_bounds = array<i64: 2, 1, 8>}, {pipeline_mode = #tpu.pipeline_mode<synchronous>, transform_indices = @transform_2, window_bounds = array<i64: 1, 32>}, {pipeline_mode = #tpu.pipeline_mode<synchronous>, transform_indices = @transform_3, window_bounds = array<i64: 1, 32>}, {transform_indices = @transform_4, window_bounds = array<i64: 1, 32, 96>}, {transform_indices = @transform_5, window_bounds = array<i64: 1, 1, 96>}, {transform_indices = @transform_6, window_bounds = array<i64: 1, 32, 32>}, {transform_indices = @transform_7, window_bounds = array<i64: 1, 1, 32>}, {transform_indices = @transform_8, window_bounds = array<i64: 1, 1, 32>}, {transform_indices = @transform_9, window_bounds = array<i64: 1, 1, 32>}, {transform_indices = @transform_10, window_bounds = array<i64: 1, 32, 64>}, {transform_indices = @transform_11, window_bounds = array<i64: 1, 1, 64>}, {transform_indices = @transform_12, window_bounds = array<i64: 1, 64, 32>}, {transform_indices = @transform_13, window_bounds = array<i64: 1, 1, 32>}, {transform_indices = @transform_14, window_bounds = array<i64: 1, 1, 32>}, {transform_indices = @transform_15, window_bounds = array<i64: 1, 1, 32>}, {pipeline_mode = #tpu.pipeline_mode<synchronous>, transform_indices = @transform_16, window_bounds = array<i64: 32, 32>}, {pipeline_mode = #tpu.pipeline_mode<synchronous>, transform_indices = @transform_17, window_bounds = array<i64: 1, 32>}, {pipeline_mode = #tpu.pipeline_mode<synchronous>, transform_indices = @transform_18, window_bounds = array<i64: 32, 128>}, {pipeline_mode = #tpu.pipeline_mode<synchronous>, transform_indices = @transform_19, window_bounds = array<i64: 1, 128>}, {pipeline_mode = #tpu.pipeline_mode<synchronous>, transform_indices = @transform_20, window_bounds = array<i64: 16, 32>}, {pipeline_mode = #tpu.pipeline_mode<synchronous>, transform_indices = @transform_21, window_bounds = array<i64: 2, 128>}]} {
    %c0_i32 = arith.constant 0 : i32
    %0 = arith.cmpi eq, %arg0, %c0_i32 : i32
    %1 = arith.extui %0 : i1 to i32
    %c0_i32_0 = arith.constant 0 : i32
    %2 = arith.cmpi ne, %1, %c0_i32_0 : i32
    scf.if %2 {
      %c0_69 = arith.constant 0 : index
      %c0_70 = arith.constant 0 : index
      %225 = vector.load %arg1[%c0_69, %c0_70] : memref<16x32xf32, #tpu.memory_space<vmem>>, vector<16x32xf32>
      %c0_71 = arith.constant 0 : index
      %c0_72 = arith.constant 0 : index
      %226 = vector.load %arg3[%c0_71, %c0_72] : memref<1x32xf32, #tpu.memory_space<vmem>>, vector<1x32xf32>
      %c0_73 = arith.constant 0 : index
      %c0_74 = arith.constant 0 : index
      %227 = vector.load %arg4[%c0_73, %c0_74] : memref<1x32xf32, #tpu.memory_space<vmem>>, vector<1x32xf32>
      %cst_75 = arith.constant dense<0.000000e+00> : vector<16xf32>
      %228 = vector.multi_reduction <add>, %225, %cst_75 [1] : vector<16x32xf32> to vector<16xf32>
      %229 = vector.shape_cast %228 : vector<16xf32> to vector<16x1xf32>
      %cst_76 = arith.constant 3.200000e+01 : f32
      %230 = vector.broadcast %cst_76 : f32 to vector<16x1xf32>
      %231 = arith.divf %229, %230 : vector<16x1xf32>
      %232 = vector.broadcast %231 : vector<16x1xf32> to vector<16x32xf32>
      %233 = arith.subf %225, %232 : vector<16x32xf32>
      %234 = arith.mulf %233, %233 : vector<16x32xf32>
      %cst_77 = arith.constant dense<0.000000e+00> : vector<16xf32>
      %235 = vector.multi_reduction <add>, %234, %cst_77 [1] : vector<16x32xf32> to vector<16xf32>
      %236 = vector.shape_cast %235 : vector<16xf32> to vector<16x1xf32>
      %cst_78 = arith.constant 3.200000e+01 : f32
      %237 = vector.broadcast %cst_78 : f32 to vector<16x1xf32>
      %238 = arith.divf %236, %237 : vector<16x1xf32>
      %239 = vector.broadcast %231 : vector<16x1xf32> to vector<16x32xf32>
      %240 = arith.subf %225, %239 : vector<16x32xf32>
      %cst_79 = arith.constant 9.99999996E-13 : f32
      %241 = vector.broadcast %cst_79 : f32 to vector<16x1xf32>
      %242 = arith.addf %238, %241 : vector<16x1xf32>
      %243 = math.rsqrt %242 : vector<16x1xf32>
      %244 = vector.broadcast %243 : vector<16x1xf32> to vector<16x32xf32>
      %245 = arith.mulf %240, %244 : vector<16x32xf32>
      %246 = vector.broadcast %226 : vector<1x32xf32> to vector<16x32xf32>
      %247 = arith.mulf %245, %246 : vector<16x32xf32>
      %248 = vector.broadcast %227 : vector<1x32xf32> to vector<16x32xf32>
      %249 = arith.addf %247, %248 : vector<16x32xf32>
      %c0_80 = arith.constant 0 : index
      %c0_81 = arith.constant 0 : index
      %250 = vector.load %arg21[%c0_80, %c0_81] : memref<16x32xf32, #tpu.memory_space<vmem>>, vector<16x32xf32>
      tpu.vector_store %arg21[%c0_80, %c0_81], %249 {strides = array<i32>} : memref<16x32xf32, #tpu.memory_space<vmem>>, vector<16x32xf32>,
      %cst_82 = arith.constant 0.000000e+00 : f32
      %251 = vector.broadcast %cst_82 : f32 to vector<2x128xf32>
      %c0_83 = arith.constant 0 : index
      %c0_84 = arith.constant 0 : index
      %252 = vector.load %arg22[%c0_83, %c0_84] : memref<2x128xf32, #tpu.memory_space<vmem>>, vector<2x128xf32>
      tpu.vector_store %arg22[%c0_83, %c0_84], %251 {strides = array<i32>} : memref<2x128xf32, #tpu.memory_space<vmem>>, vector<2x128xf32>,
    } else {
    }
    %c0 = arith.constant 0 : index
    %c0_1 = arith.constant 0 : index
    %3 = vector.load %arg21[%c0, %c0_1] : memref<16x32xf32, #tpu.memory_space<vmem>>, vector<16x32xf32>
    %4 = arith.truncf %3 : vector<16x32xf32> to vector<16x32xbf16>
    %c0_2 = arith.constant 0 : index
    %c0_3 = arith.constant 0 : index
    %c0_4 = arith.constant 0 : index
    %5 = vector.load %arg5[%c0_2, %c0_3, %c0_4] : memref<1x32x96xbf16, #tpu.memory_space<vmem>>, vector<1x32x96xbf16>
    %6 = vector.shape_cast %5 : vector<1x32x96xbf16> to vector<32x96xbf16>
    %cst = arith.constant dense<0.000000e+00> : vector<16x96xf32>
    %7 = tpu.matmul %4, %6, %cst {dimension_numbers = #tpu.dot_dimension_numbers<[1], [0], [0], [1], [0, 0, 1, 1], [], []>} : vector<16x32xbf16>, vector<32x96xbf16>, vector<16x96xf32> -> vector<16x96xf32>
    %c0_5 = arith.constant 0 : index
    %c0_6 = arith.constant 0 : index
    %c0_7 = arith.constant 0 : index
    %8 = vector.load %arg6[%c0_5, %c0_6, %c0_7] : memref<1x1x96xf32, #tpu.memory_space<vmem>>, vector<1x1x96xf32>
    %9 = vector.shape_cast %8 : vector<1x1x96xf32> to vector<1x96xf32>
    %10 = vector.broadcast %9 : vector<1x96xf32> to vector<16x96xf32>
    %11 = arith.addf %7, %10 : vector<16x96xf32>
    %c0_8 = arith.constant 0 : index
    %c0_9 = arith.constant 0 : index
    %c0_10 = arith.constant 0 : index
    %12 = vector.load %arg2[%c0_8, %c0_9, %c0_10] : memref<2x1x8xf32, #tpu.memory_space<vmem>>, vector<2x1x8xf32>
    %13 = vector.extract_strided_slice %11 {offsets = [0, 0], sizes = [8, 96], strides = [1, 1]} : vector<16x96xf32> to vector<8x96xf32>
    %14 = vector.extract_strided_slice %13 {offsets = [0, 0], sizes = [8, 8], strides = [1, 1]} : vector<8x96xf32> to vector<8x8xf32>
    %15 = vector.extract_strided_slice %13 {offsets = [0, 8], sizes = [8, 8], strides = [1, 1]} : vector<8x96xf32> to vector<8x8xf32>
    %16 = vector.extract_strided_slice %13 {offsets = [0, 16], sizes = [8, 8], strides = [1, 1]} : vector<8x96xf32> to vector<8x8xf32>
    %17 = vector.extract_strided_slice %13 {offsets = [0, 24], sizes = [8, 8], strides = [1, 1]} : vector<8x96xf32> to vector<8x8xf32>
    %18 = vector.shape_cast %14 : vector<8x8xf32> to vector<1x8x8xf32>
    %19 = vector.shape_cast %15 : vector<8x8xf32> to vector<1x8x8xf32>
    %20 = vector.shape_cast %16 : vector<8x8xf32> to vector<1x8x8xf32>
    %21 = vector.shape_cast %17 : vector<8x8xf32> to vector<1x8x8xf32>
    %22 = tpu.concatenate %18, %19, %20, %21 in 0 : vector<1x8x8xf32>, vector<1x8x8xf32>, vector<1x8x8xf32>, vector<1x8x8xf32> -> vector<4x8x8xf32>
    %23 = vector.extract_strided_slice %13 {offsets = [0, 32], sizes = [8, 8], strides = [1, 1]} : vector<8x96xf32> to vector<8x8xf32>
    %24 = vector.extract_strided_slice %13 {offsets = [0, 40], sizes = [8, 8], strides = [1, 1]} : vector<8x96xf32> to vector<8x8xf32>
    %25 = vector.extract_strided_slice %13 {offsets = [0, 48], sizes = [8, 8], strides = [1, 1]} : vector<8x96xf32> to vector<8x8xf32>
    %26 = vector.extract_strided_slice %13 {offsets = [0, 56], sizes = [8, 8], strides = [1, 1]} : vector<8x96xf32> to vector<8x8xf32>
    %27 = vector.shape_cast %23 : vector<8x8xf32> to vector<1x8x8xf32>
    %28 = vector.shape_cast %24 : vector<8x8xf32> to vector<1x8x8xf32>
    %29 = vector.shape_cast %25 : vector<8x8xf32> to vector<1x8x8xf32>
    %30 = vector.shape_cast %26 : vector<8x8xf32> to vector<1x8x8xf32>
    %31 = tpu.concatenate %27, %28, %29, %30 in 0 : vector<1x8x8xf32>, vector<1x8x8xf32>, vector<1x8x8xf32>, vector<1x8x8xf32> -> vector<4x8x8xf32>
    %32 = vector.extract_strided_slice %13 {offsets = [0, 64], sizes = [8, 8], strides = [1, 1]} : vector<8x96xf32> to vector<8x8xf32>
    %33 = vector.extract_strided_slice %13 {offsets = [0, 72], sizes = [8, 8], strides = [1, 1]} : vector<8x96xf32> to vector<8x8xf32>
    %34 = vector.extract_strided_slice %13 {offsets = [0, 80], sizes = [8, 8], strides = [1, 1]} : vector<8x96xf32> to vector<8x8xf32>
    %35 = vector.extract_strided_slice %13 {offsets = [0, 88], sizes = [8, 8], strides = [1, 1]} : vector<8x96xf32> to vector<8x8xf32>
    %36 = vector.shape_cast %32 : vector<8x8xf32> to vector<1x8x8xf32>
    %37 = vector.shape_cast %33 : vector<8x8xf32> to vector<1x8x8xf32>
    %38 = vector.shape_cast %34 : vector<8x8xf32> to vector<1x8x8xf32>
    %39 = vector.shape_cast %35 : vector<8x8xf32> to vector<1x8x8xf32>
    %40 = tpu.concatenate %36, %37, %38, %39 in 0 : vector<1x8x8xf32>, vector<1x8x8xf32>, vector<1x8x8xf32>, vector<1x8x8xf32> -> vector<4x8x8xf32>
    %41 = arith.truncf %22 : vector<4x8x8xf32> to vector<4x8x8xbf16>
    %42 = arith.truncf %31 : vector<4x8x8xf32> to vector<4x8x8xbf16>
    "tpu.trace_start"() <{level = 10 : i32, message = "hqd,hkd->hqk"}> : () -> ()
    %cst_11 = arith.constant dense<0.000000e+00> : vector<4x8x8xf32>
    %43 = tpu.matmul %41, %42, %cst_11 {dimension_numbers = #tpu.dot_dimension_numbers<[2], [2], [1], [1], [0, 0, 0, 1, 1, 1], [0], [0]>} : vector<4x8x8xbf16>, vector<4x8x8xbf16>, vector<4x8x8xf32> -> vector<4x8x8xf32>
    "tpu.trace_stop"() : () -> ()
    %44 = vector.extract_strided_slice %12 {offsets = [0, 0, 0], sizes = [1, 1, 8], strides = [1, 1, 1]} : vector<2x1x8xf32> to vector<1x1x8xf32>
    %45 = vector.shape_cast %44 : vector<1x1x8xf32> to vector<1x8xf32>
    %46 = vector.shape_cast %45 : vector<1x8xf32> to vector<1x1x8xf32>
    %47 = vector.broadcast %46 : vector<1x1x8xf32> to vector<4x8x8xf32>
    %48 = arith.addf %43, %47 : vector<4x8x8xf32>
    %cst_12 = arith.constant dense<0xFF800000> : vector<4x8xf32>
    %49 = vector.multi_reduction <maximumf>, %48, %cst_12 [2] : vector<4x8x8xf32> to vector<4x8xf32>
    %50 = vector.shape_cast %49 : vector<4x8xf32> to vector<4x8x1xf32>
    %51 = vector.broadcast %50 : vector<4x8x1xf32> to vector<4x8x8xf32>
    %52 = arith.subf %48, %51 : vector<4x8x8xf32>
    %53 = math.exp %52 : vector<4x8x8xf32>
    %cst_13 = arith.constant dense<0.000000e+00> : vector<4x8xf32>
    %54 = vector.multi_reduction <add>, %53, %cst_13 [2] : vector<4x8x8xf32> to vector<4x8xf32>
    %55 = vector.shape_cast %54 : vector<4x8xf32> to vector<4x8x1xf32>
    %56 = tpu.reciprocal %55 {approx = true} : vector<4x8x1xf32> -> vector<4x8x1xf32>
    %57 = vector.broadcast %56 : vector<4x8x1xf32> to vector<4x8x8xf32>
    %58 = arith.mulf %53, %57 : vector<4x8x8xf32>
    %59 = arith.truncf %58 : vector<4x8x8xf32> to vector<4x8x8xbf16>
    %60 = arith.truncf %40 : vector<4x8x8xf32> to vector<4x8x8xbf16>
    "tpu.trace_start"() <{level = 10 : i32, message = "hqk,hkd->hqd"}> : () -> ()
    %cst_14 = arith.constant dense<0.000000e+00> : vector<4x8x8xf32>
    %61 = tpu.matmul %59, %60, %cst_14 {dimension_numbers = #tpu.dot_dimension_numbers<[2], [1], [1], [2], [0, 0, 0, 1, 1, 2], [0], [0]>} : vector<4x8x8xbf16>, vector<4x8x8xbf16>, vector<4x8x8xf32> -> vector<4x8x8xf32>
    "tpu.trace_stop"() : () -> ()
    %62 = vector.extract_strided_slice %61 {offsets = [0, 0, 0], sizes = [1, 8, 8], strides = [1, 1, 1]} : vector<4x8x8xf32> to vector<1x8x8xf32>
    %63 = vector.shape_cast %62 : vector<1x8x8xf32> to vector<8x8xf32>
    %64 = vector.extract_strided_slice %61 {offsets = [1, 0, 0], sizes = [1, 8, 8], strides = [1, 1, 1]} : vector<4x8x8xf32> to vector<1x8x8xf32>
    %65 = vector.shape_cast %64 : vector<1x8x8xf32> to vector<8x8xf32>
    %66 = vector.extract_strided_slice %61 {offsets = [2, 0, 0], sizes = [1, 8, 8], strides = [1, 1, 1]} : vector<4x8x8xf32> to vector<1x8x8xf32>
    %67 = vector.shape_cast %66 : vector<1x8x8xf32> to vector<8x8xf32>
    %68 = vector.extract_strided_slice %61 {offsets = [3, 0, 0], sizes = [1, 8, 8], strides = [1, 1, 1]} : vector<4x8x8xf32> to vector<1x8x8xf32>
    %69 = vector.shape_cast %68 : vector<1x8x8xf32> to vector<8x8xf32>
    %70 = tpu.concatenate %63, %65, %67, %69 in 1 : vector<8x8xf32>, vector<8x8xf32>, vector<8x8xf32>, vector<8x8xf32> -> vector<8x32xf32>
    %71 = vector.extract_strided_slice %11 {offsets = [8, 0], sizes = [8, 96], strides = [1, 1]} : vector<16x96xf32> to vector<8x96xf32>
    %72 = vector.extract_strided_slice %71 {offsets = [0, 0], sizes = [8, 8], strides = [1, 1]} : vector<8x96xf32> to vector<8x8xf32>
    %73 = vector.extract_strided_slice %71 {offsets = [0, 8], sizes = [8, 8], strides = [1, 1]} : vector<8x96xf32> to vector<8x8xf32>
    %74 = vector.extract_strided_slice %71 {offsets = [0, 16], sizes = [8, 8], strides = [1, 1]} : vector<8x96xf32> to vector<8x8xf32>
    %75 = vector.extract_strided_slice %71 {offsets = [0, 24], sizes = [8, 8], strides = [1, 1]} : vector<8x96xf32> to vector<8x8xf32>
    %76 = vector.shape_cast %72 : vector<8x8xf32> to vector<1x8x8xf32>
    %77 = vector.shape_cast %73 : vector<8x8xf32> to vector<1x8x8xf32>
    %78 = vector.shape_cast %74 : vector<8x8xf32> to vector<1x8x8xf32>
    %79 = vector.shape_cast %75 : vector<8x8xf32> to vector<1x8x8xf32>
    %80 = tpu.concatenate %76, %77, %78, %79 in 0 : vector<1x8x8xf32>, vector<1x8x8xf32>, vector<1x8x8xf32>, vector<1x8x8xf32> -> vector<4x8x8xf32>
    %81 = vector.extract_strided_slice %71 {offsets = [0, 32], sizes = [8, 8], strides = [1, 1]} : vector<8x96xf32> to vector<8x8xf32>
    %82 = vector.extract_strided_slice %71 {offsets = [0, 40], sizes = [8, 8], strides = [1, 1]} : vector<8x96xf32> to vector<8x8xf32>
    %83 = vector.extract_strided_slice %71 {offsets = [0, 48], sizes = [8, 8], strides = [1, 1]} : vector<8x96xf32> to vector<8x8xf32>
    %84 = vector.extract_strided_slice %71 {offsets = [0, 56], sizes = [8, 8], strides = [1, 1]} : vector<8x96xf32> to vector<8x8xf32>
    %85 = vector.shape_cast %81 : vector<8x8xf32> to vector<1x8x8xf32>
    %86 = vector.shape_cast %82 : vector<8x8xf32> to vector<1x8x8xf32>
    %87 = vector.shape_cast %83 : vector<8x8xf32> to vector<1x8x8xf32>
    %88 = vector.shape_cast %84 : vector<8x8xf32> to vector<1x8x8xf32>
    %89 = tpu.concatenate %85, %86, %87, %88 in 0 : vector<1x8x8xf32>, vector<1x8x8xf32>, vector<1x8x8xf32>, vector<1x8x8xf32> -> vector<4x8x8xf32>
    %90 = vector.extract_strided_slice %71 {offsets = [0, 64], sizes = [8, 8], strides = [1, 1]} : vector<8x96xf32> to vector<8x8xf32>
    %91 = vector.extract_strided_slice %71 {offsets = [0, 72], sizes = [8, 8], strides = [1, 1]} : vector<8x96xf32> to vector<8x8xf32>
    %92 = vector.extract_strided_slice %71 {offsets = [0, 80], sizes = [8, 8], strides = [1, 1]} : vector<8x96xf32> to vector<8x8xf32>
    %93 = vector.extract_strided_slice %71 {offsets = [0, 88], sizes = [8, 8], strides = [1, 1]} : vector<8x96xf32> to vector<8x8xf32>
    %94 = vector.shape_cast %90 : vector<8x8xf32> to vector<1x8x8xf32>
    %95 = vector.shape_cast %91 : vector<8x8xf32> to vector<1x8x8xf32>
    %96 = vector.shape_cast %92 : vector<8x8xf32> to vector<1x8x8xf32>
    %97 = vector.shape_cast %93 : vector<8x8xf32> to vector<1x8x8xf32>
    %98 = tpu.concatenate %94, %95, %96, %97 in 0 : vector<1x8x8xf32>, vector<1x8x8xf32>, vector<1x8x8xf32>, vector<1x8x8xf32> -> vector<4x8x8xf32>
    %99 = arith.truncf %80 : vector<4x8x8xf32> to vector<4x8x8xbf16>
    %100 = arith.truncf %89 : vector<4x8x8xf32> to vector<4x8x8xbf16>
    "tpu.trace_start"() <{level = 10 : i32, message = "hqd,hkd->hqk"}> : () -> ()
    %cst_15 = arith.constant dense<0.000000e+00> : vector<4x8x8xf32>
    %101 = tpu.matmul %99, %100, %cst_15 {dimension_numbers = #tpu.dot_dimension_numbers<[2], [2], [1], [1], [0, 0, 0, 1, 1, 1], [0], [0]>} : vector<4x8x8xbf16>, vector<4x8x8xbf16>, vector<4x8x8xf32> -> vector<4x8x8xf32>
    "tpu.trace_stop"() : () -> ()
    %102 = vector.extract_strided_slice %12 {offsets = [1, 0, 0], sizes = [1, 1, 8], strides = [1, 1, 1]} : vector<2x1x8xf32> to vector<1x1x8xf32>
    %103 = vector.shape_cast %102 : vector<1x1x8xf32> to vector<1x8xf32>
    %104 = vector.shape_cast %103 : vector<1x8xf32> to vector<1x1x8xf32>
    %105 = vector.broadcast %104 : vector<1x1x8xf32> to vector<4x8x8xf32>
    %106 = arith.addf %101, %105 : vector<4x8x8xf32>
    %cst_16 = arith.constant dense<0xFF800000> : vector<4x8xf32>
    %107 = vector.multi_reduction <maximumf>, %106, %cst_16 [2] : vector<4x8x8xf32> to vector<4x8xf32>
    %108 = vector.shape_cast %107 : vector<4x8xf32> to vector<4x8x1xf32>
    %109 = vector.broadcast %108 : vector<4x8x1xf32> to vector<4x8x8xf32>
    %110 = arith.subf %106, %109 : vector<4x8x8xf32>
    %111 = math.exp %110 : vector<4x8x8xf32>
    %cst_17 = arith.constant dense<0.000000e+00> : vector<4x8xf32>
    %112 = vector.multi_reduction <add>, %111, %cst_17 [2] : vector<4x8x8xf32> to vector<4x8xf32>
    %113 = vector.shape_cast %112 : vector<4x8xf32> to vector<4x8x1xf32>
    %114 = tpu.reciprocal %113 {approx = true} : vector<4x8x1xf32> -> vector<4x8x1xf32>
    %115 = vector.broadcast %114 : vector<4x8x1xf32> to vector<4x8x8xf32>
    %116 = arith.mulf %111, %115 : vector<4x8x8xf32>
    %117 = arith.truncf %116 : vector<4x8x8xf32> to vector<4x8x8xbf16>
    %118 = arith.truncf %98 : vector<4x8x8xf32> to vector<4x8x8xbf16>
    "tpu.trace_start"() <{level = 10 : i32, message = "hqk,hkd->hqd"}> : () -> ()
    %cst_18 = arith.constant dense<0.000000e+00> : vector<4x8x8xf32>
    %119 = tpu.matmul %117, %118, %cst_18 {dimension_numbers = #tpu.dot_dimension_numbers<[2], [1], [1], [2], [0, 0, 0, 1, 1, 2], [0], [0]>} : vector<4x8x8xbf16>, vector<4x8x8xbf16>, vector<4x8x8xf32> -> vector<4x8x8xf32>
    "tpu.trace_stop"() : () -> ()
    %120 = vector.extract_strided_slice %119 {offsets = [0, 0, 0], sizes = [1, 8, 8], strides = [1, 1, 1]} : vector<4x8x8xf32> to vector<1x8x8xf32>
    %121 = vector.shape_cast %120 : vector<1x8x8xf32> to vector<8x8xf32>
    %122 = vector.extract_strided_slice %119 {offsets = [1, 0, 0], sizes = [1, 8, 8], strides = [1, 1, 1]} : vector<4x8x8xf32> to vector<1x8x8xf32>
    %123 = vector.shape_cast %122 : vector<1x8x8xf32> to vector<8x8xf32>
    %124 = vector.extract_strided_slice %119 {offsets = [2, 0, 0], sizes = [1, 8, 8], strides = [1, 1, 1]} : vector<4x8x8xf32> to vector<1x8x8xf32>
    %125 = vector.shape_cast %124 : vector<1x8x8xf32> to vector<8x8xf32>
    %126 = vector.extract_strided_slice %119 {offsets = [3, 0, 0], sizes = [1, 8, 8], strides = [1, 1, 1]} : vector<4x8x8xf32> to vector<1x8x8xf32>
    %127 = vector.shape_cast %126 : vector<1x8x8xf32> to vector<8x8xf32>
    %128 = tpu.concatenate %121, %123, %125, %127 in 1 : vector<8x8xf32>, vector<8x8xf32>, vector<8x8xf32>, vector<8x8xf32> -> vector<8x32xf32>
    %129 = tpu.concatenate %70, %128 in 0 : vector<8x32xf32>, vector<8x32xf32> -> vector<16x32xf32>
    %130 = arith.truncf %129 : vector<16x32xf32> to vector<16x32xbf16>
    %c0_19 = arith.constant 0 : index
    %c0_20 = arith.constant 0 : index
    %c0_21 = arith.constant 0 : index
    %131 = vector.load %arg7[%c0_19, %c0_20, %c0_21] : memref<1x32x32xbf16, #tpu.memory_space<vmem>>, vector<1x32x32xbf16>
    %132 = vector.shape_cast %131 : vector<1x32x32xbf16> to vector<32x32xbf16>
    %cst_22 = arith.constant dense<0.000000e+00> : vector<16x32xf32>
    %133 = tpu.matmul %130, %132, %cst_22 {dimension_numbers = #tpu.dot_dimension_numbers<[1], [0], [0], [1], [0, 0, 1, 1], [], []>} : vector<16x32xbf16>, vector<32x32xbf16>, vector<16x32xf32> -> vector<16x32xf32>
    %c0_23 = arith.constant 0 : index
    %c0_24 = arith.constant 0 : index
    %c0_25 = arith.constant 0 : index
    %134 = vector.load %arg8[%c0_23, %c0_24, %c0_25] : memref<1x1x32xf32, #tpu.memory_space<vmem>>, vector<1x1x32xf32>
    %135 = vector.shape_cast %134 : vector<1x1x32xf32> to vector<1x32xf32>
    %136 = vector.broadcast %135 : vector<1x32xf32> to vector<16x32xf32>
    %137 = arith.addf %133, %136 : vector<16x32xf32>
    %138 = arith.addf %137, %3 : vector<16x32xf32>
    %c0_26 = arith.constant 0 : index
    %c0_27 = arith.constant 0 : index
    %c0_28 = arith.constant 0 : index
    %139 = vector.load %arg9[%c0_26, %c0_27, %c0_28] : memref<1x1x32xf32, #tpu.memory_space<vmem>>, vector<1x1x32xf32>
    %140 = vector.shape_cast %139 : vector<1x1x32xf32> to vector<1x32xf32>
    %c0_29 = arith.constant 0 : index
    %c0_30 = arith.constant 0 : index
    %c0_31 = arith.constant 0 : index
    %141 = vector.load %arg10[%c0_29, %c0_30, %c0_31] : memref<1x1x32xf32, #tpu.memory_space<vmem>>, vector<1x1x32xf32>
    %142 = vector.shape_cast %141 : vector<1x1x32xf32> to vector<1x32xf32>
    %cst_32 = arith.constant dense<0.000000e+00> : vector<16xf32>
    %143 = vector.multi_reduction <add>, %138, %cst_32 [1] : vector<16x32xf32> to vector<16xf32>
    %144 = vector.shape_cast %143 : vector<16xf32> to vector<16x1xf32>
    %cst_33 = arith.constant 3.200000e+01 : f32
    %145 = vector.broadcast %cst_33 : f32 to vector<16x1xf32>
    %146 = arith.divf %144, %145 : vector<16x1xf32>
    %147 = vector.broadcast %146 : vector<16x1xf32> to vector<16x32xf32>
    %148 = arith.subf %138, %147 : vector<16x32xf32>
    %149 = arith.mulf %148, %148 : vector<16x32xf32>
    %cst_34 = arith.constant dense<0.000000e+00> : vector<16xf32>
    %150 = vector.multi_reduction <add>, %149, %cst_34 [1] : vector<16x32xf32> to vector<16xf32>
    %151 = vector.shape_cast %150 : vector<16xf32> to vector<16x1xf32>
    %cst_35 = arith.constant 3.200000e+01 : f32
    %152 = vector.broadcast %cst_35 : f32 to vector<16x1xf32>
    %153 = arith.divf %151, %152 : vector<16x1xf32>
    %154 = vector.broadcast %146 : vector<16x1xf32> to vector<16x32xf32>
    %155 = arith.subf %138, %154 : vector<16x32xf32>
    %cst_36 = arith.constant 9.99999996E-13 : f32
    %156 = vector.broadcast %cst_36 : f32 to vector<16x1xf32>
    %157 = arith.addf %153, %156 : vector<16x1xf32>
    %158 = math.rsqrt %157 : vector<16x1xf32>
    %159 = vector.broadcast %158 : vector<16x1xf32> to vector<16x32xf32>
    %160 = arith.mulf %155, %159 : vector<16x32xf32>
    %161 = vector.broadcast %140 : vector<1x32xf32> to vector<16x32xf32>
    %162 = arith.mulf %160, %161 : vector<16x32xf32>
    %163 = vector.broadcast %142 : vector<1x32xf32> to vector<16x32xf32>
    %164 = arith.addf %162, %163 : vector<16x32xf32>
    %165 = arith.truncf %164 : vector<16x32xf32> to vector<16x32xbf16>
    %c0_37 = arith.constant 0 : index
    %c0_38 = arith.constant 0 : index
    %c0_39 = arith.constant 0 : index
    %166 = vector.load %arg11[%c0_37, %c0_38, %c0_39] : memref<1x32x64xbf16, #tpu.memory_space<vmem>>, vector<1x32x64xbf16>
    %167 = vector.shape_cast %166 : vector<1x32x64xbf16> to vector<32x64xbf16>
    %cst_40 = arith.constant dense<0.000000e+00> : vector<16x64xf32>
    %168 = tpu.matmul %165, %167, %cst_40 {dimension_numbers = #tpu.dot_dimension_numbers<[1], [0], [0], [1], [0, 0, 1, 1], [], []>} : vector<16x32xbf16>, vector<32x64xbf16>, vector<16x64xf32> -> vector<16x64xf32>
    %c0_41 = arith.constant 0 : index
    %c0_42 = arith.constant 0 : index
    %c0_43 = arith.constant 0 : index
    %169 = vector.load %arg12[%c0_41, %c0_42, %c0_43] : memref<1x1x64xf32, #tpu.memory_space<vmem>>, vector<1x1x64xf32>
    %170 = vector.shape_cast %169 : vector<1x1x64xf32> to vector<1x64xf32>
    %171 = vector.broadcast %170 : vector<1x64xf32> to vector<16x64xf32>
    %172 = arith.addf %168, %171 : vector<16x64xf32>
    %cst_44 = arith.constant 5.000000e-01 : f32
    %173 = vector.broadcast %cst_44 : f32 to vector<16x64xf32>
    %174 = arith.mulf %173, %172 : vector<16x64xf32>
    %cst_45 = arith.constant 4.471500e-02 : f32
    %175 = vector.broadcast %cst_45 : f32 to vector<16x64xf32>
    %176 = arith.mulf %175, %172 : vector<16x64xf32>
    %177 = arith.mulf %176, %172 : vector<16x64xf32>
    %178 = arith.mulf %177, %172 : vector<16x64xf32>
    %179 = arith.addf %172, %178 : vector<16x64xf32>
    %cst_46 = arith.constant 0.797884583 : f32
    %180 = vector.broadcast %cst_46 : f32 to vector<16x64xf32>
    %181 = arith.mulf %180, %179 : vector<16x64xf32>
    %182 = math.tanh %181 : vector<16x64xf32>
    %cst_47 = arith.constant 1.000000e+00 : f32
    %183 = vector.broadcast %cst_47 : f32 to vector<16x64xf32>
    %184 = arith.addf %183, %182 : vector<16x64xf32>
    %185 = arith.mulf %174, %184 : vector<16x64xf32>
    %186 = arith.truncf %185 : vector<16x64xf32> to vector<16x64xbf16>
    %c0_48 = arith.constant 0 : index
    %c0_49 = arith.constant 0 : index
    %c0_50 = arith.constant 0 : index
    %187 = vector.load %arg13[%c0_48, %c0_49, %c0_50] : memref<1x64x32xbf16, #tpu.memory_space<vmem>>, vector<1x64x32xbf16>
    %188 = vector.shape_cast %187 : vector<1x64x32xbf16> to vector<64x32xbf16>
    %cst_51 = arith.constant dense<0.000000e+00> : vector<16x32xf32>
    %189 = tpu.matmul %186, %188, %cst_51 {dimension_numbers = #tpu.dot_dimension_numbers<[1], [0], [0], [1], [0, 0, 1, 1], [], []>} : vector<16x64xbf16>, vector<64x32xbf16>, vector<16x32xf32> -> vector<16x32xf32>
    %c0_52 = arith.constant 0 : index
    %c0_53 = arith.constant 0 : index
    %c0_54 = arith.constant 0 : index
    %190 = vector.load %arg14[%c0_52, %c0_53, %c0_54] : memref<1x1x32xf32, #tpu.memory_space<vmem>>, vector<1x1x32xf32>
    %191 = vector.shape_cast %190 : vector<1x1x32xf32> to vector<1x32xf32>
    %192 = vector.broadcast %191 : vector<1x32xf32> to vector<16x32xf32>
    %193 = arith.addf %189, %192 : vector<16x32xf32>
    %194 = arith.addf %193, %164 : vector<16x32xf32>
    %c0_55 = arith.constant 0 : index
    %c0_56 = arith.constant 0 : index
    %c0_57 = arith.constant 0 : index
    %195 = vector.load %arg15[%c0_55, %c0_56, %c0_57] : memref<1x1x32xf32, #tpu.memory_space<vmem>>, vector<1x1x32xf32>
    %196 = vector.shape_cast %195 : vector<1x1x32xf32> to vector<1x32xf32>
    %c0_58 = arith.constant 0 : index
    %c0_59 = arith.constant 0 : index
    %c0_60 = arith.constant 0 : index
    %197 = vector.load %arg16[%c0_58, %c0_59, %c0_60] : memref<1x1x32xf32, #tpu.memory_space<vmem>>, vector<1x1x32xf32>
    %198 = vector.shape_cast %197 : vector<1x1x32xf32> to vector<1x32xf32>
    %cst_61 = arith.constant dense<0.000000e+00> : vector<16xf32>
    %199 = vector.multi_reduction <add>, %194, %cst_61 [1] : vector<16x32xf32> to vector<16xf32>
    %200 = vector.shape_cast %199 : vector<16xf32> to vector<16x1xf32>
    %cst_62 = arith.constant 3.200000e+01 : f32
    %201 = vector.broadcast %cst_62 : f32 to vector<16x1xf32>
    %202 = arith.divf %200, %201 : vector<16x1xf32>
    %203 = vector.broadcast %202 : vector<16x1xf32> to vector<16x32xf32>
    %204 = arith.subf %194, %203 : vector<16x32xf32>
    %205 = arith.mulf %204, %204 : vector<16x32xf32>
    %cst_63 = arith.constant dense<0.000000e+00> : vector<16xf32>
    %206 = vector.multi_reduction <add>, %205, %cst_63 [1] : vector<16x32xf32> to vector<16xf32>
    %207 = vector.shape_cast %206 : vector<16xf32> to vector<16x1xf32>
    %cst_64 = arith.constant 3.200000e+01 : f32
    %208 = vector.broadcast %cst_64 : f32 to vector<16x1xf32>
    %209 = arith.divf %207, %208 : vector<16x1xf32>
    %210 = vector.broadcast %202 : vector<16x1xf32> to vector<16x32xf32>
    %211 = arith.subf %194, %210 : vector<16x32xf32>
    %cst_65 = arith.constant 9.99999996E-13 : f32
    %212 = vector.broadcast %cst_65 : f32 to vector<16x1xf32>
    %213 = arith.addf %209, %212 : vector<16x1xf32>
    %214 = math.rsqrt %213 : vector<16x1xf32>
    %215 = vector.broadcast %214 : vector<16x1xf32> to vector<16x32xf32>
    %216 = arith.mulf %211, %215 : vector<16x32xf32>
    %217 = vector.broadcast %196 : vector<1x32xf32> to vector<16x32xf32>
    %218 = arith.mulf %216, %217 : vector<16x32xf32>
    %219 = vector.broadcast %198 : vector<1x32xf32> to vector<16x32xf32>
    %220 = arith.addf %218, %219 : vector<16x32xf32>
    %c0_66 = arith.constant 0 : index
    %c0_67 = arith.constant 0 : index
    %221 = vector.load %arg21[%c0_66, %c0_67] : memref<16x32xf32, #tpu.memory_space<vmem>>, vector<16x32xf32>
    tpu.vector_store %arg21[%c0_66, %c0_67], %220 {strides = array<i32>} : memref<16x32xf32, #tpu.memory_space<vmem>>, vector<16x32xf32>,
    %c1_i32 = arith.constant 1 : i32
    %222 = arith.cmpi eq, %arg0, %c1_i32 : i32
    %223 = arith.extui %222 : i1 to i32
    %c0_i32_68 = arith.constant 0 : i32
    %224 = arith.cmpi ne, %223, %c0_i32_68 : i32
    scf.if %224 {
      %225 = vector.extract_strided_slice %220 {offsets = [0, 0], sizes = [1, 32], strides = [1, 1]} : vector<16x32xf32> to vector<1x32xf32>
      %226 = vector.extract_strided_slice %220 {offsets = [8, 0], sizes = [1, 32], strides = [1, 1]} : vector<16x32xf32> to vector<1x32xf32>
      %227 = tpu.concatenate %225, %226 in 0 : vector<1x32xf32>, vector<1x32xf32> -> vector<2x32xf32>
      %228 = arith.truncf %227 : vector<2x32xf32> to vector<2x32xbf16>
      %c0_69 = arith.constant 0 : index
      %c0_70 = arith.constant 0 : index
      %229 = vector.load %arg17[%c0_69, %c0_70] : memref<32x32xbf16, #tpu.memory_space<vmem>>, vector<32x32xbf16>
      %cst_71 = arith.constant dense<0.000000e+00> : vector<2x32xf32>
      %230 = tpu.matmul %228, %229, %cst_71 {dimension_numbers = #tpu.dot_dimension_numbers<[1], [0], [0], [1], [0, 0, 1, 1], [], []>} : vector<2x32xbf16>, vector<32x32xbf16>, vector<2x32xf32> -> vector<2x32xf32>
      %c0_72 = arith.constant 0 : index
      %c0_73 = arith.constant 0 : index
      %231 = vector.load %arg18[%c0_72, %c0_73] : memref<1x32xf32, #tpu.memory_space<vmem>>, vector<1x32xf32>
      %232 = vector.broadcast %231 : vector<1x32xf32> to vector<2x32xf32>
      %233 = arith.addf %230, %232 : vector<2x32xf32>
      %234 = math.tanh %233 : vector<2x32xf32>
      %235 = arith.truncf %234 : vector<2x32xf32> to vector<2x32xbf16>
      %c0_74 = arith.constant 0 : index
      %c0_75 = arith.constant 0 : index
      %236 = vector.load %arg19[%c0_74, %c0_75] : memref<32x128xbf16, #tpu.memory_space<vmem>>, vector<32x128xbf16>
      %cst_76 = arith.constant dense<0.000000e+00> : vector<2x128xf32>
      %237 = tpu.matmul %235, %236, %cst_76 {dimension_numbers = #tpu.dot_dimension_numbers<[1], [0], [0], [1], [0, 0, 1, 1], [], []>} : vector<2x32xbf16>, vector<32x128xbf16>, vector<2x128xf32> -> vector<2x128xf32>
      %c0_77 = arith.constant 0 : index
      %c0_78 = arith.constant 0 : index
      %238 = vector.load %arg20[%c0_77, %c0_78] : memref<1x128xf32, #tpu.memory_space<vmem>>, vector<1x128xf32>
      %239 = vector.broadcast %238 : vector<1x128xf32> to vector<2x128xf32>
      %240 = arith.addf %237, %239 : vector<2x128xf32>
      %c0_79 = arith.constant 0 : index
      %c0_80 = arith.constant 0 : index
      %241 = vector.load %arg22[%c0_79, %c0_80] : memref<2x128xf32, #tpu.memory_space<vmem>>, vector<2x128xf32>
      tpu.vector_store %arg22[%c0_79, %c0_80], %240 {strides = array<i32>} : memref<2x128xf32, #tpu.memory_space<vmem>>, vector<2x128xf32>,
    } else {
    }
    return
  }
  func.func @transform_0(%arg0: i32) -> (i32, i32) {
    %c0_i32 = arith.constant 0 : i32
    %c0_i32_0 = arith.constant 0 : i32
    %c0_i32_1 = arith.constant 0 : i32
    return %c0_i32, %c0_i32_0 : i32, i32
  }
  func.func @transform_1(%arg0: i32) -> (i32, i32, i32) {
    %c0_i32 = arith.constant 0 : i32
    %c0_i32_0 = arith.constant 0 : i32
    %c0_i32_1 = arith.constant 0 : i32
    %c0_i32_2 = arith.constant 0 : i32
    return %c0_i32, %c0_i32_0, %c0_i32_1 : i32, i32, i32
  }
  func.func @transform_2(%arg0: i32) -> (i32, i32) {
    %c0_i32 = arith.constant 0 : i32
    %c0_i32_0 = arith.constant 0 : i32
    %c0_i32_1 = arith.constant 0 : i32
    return %c0_i32, %c0_i32_0 : i32, i32
  }
  func.func @transform_3(%arg0: i32) -> (i32, i32) {
    %c0_i32 = arith.constant 0 : i32
    %c0_i32_0 = arith.constant 0 : i32
    %c0_i32_1 = arith.constant 0 : i32
    return %c0_i32, %c0_i32_0 : i32, i32
  }
  func.func @transform_4(%arg0: i32) -> (i32, i32, i32) {
    %c0_i32 = arith.constant 0 : i32
    %c0_i32_0 = arith.constant 0 : i32
    %c0_i32_1 = arith.constant 0 : i32
    return %arg0, %c0_i32, %c0_i32_0 : i32, i32, i32
  }
  func.func @transform_5(%arg0: i32) -> (i32, i32, i32) {
    %c0_i32 = arith.constant 0 : i32
    %c0_i32_0 = arith.constant 0 : i32
    %c0_i32_1 = arith.constant 0 : i32
    return %arg0, %c0_i32, %c0_i32_0 : i32, i32, i32
  }
  func.func @transform_6(%arg0: i32) -> (i32, i32, i32) {
    %c0_i32 = arith.constant 0 : i32
    %c0_i32_0 = arith.constant 0 : i32
    %c0_i32_1 = arith.constant 0 : i32
    return %arg0, %c0_i32, %c0_i32_0 : i32, i32, i32
  }
  func.func @transform_7(%arg0: i32) -> (i32, i32, i32) {
    %c0_i32 = arith.constant 0 : i32
    %c0_i32_0 = arith.constant 0 : i32
    %c0_i32_1 = arith.constant 0 : i32
    return %arg0, %c0_i32, %c0_i32_0 : i32, i32, i32
  }
  func.func @transform_8(%arg0: i32) -> (i32, i32, i32) {
    %c0_i32 = arith.constant 0 : i32
    %c0_i32_0 = arith.constant 0 : i32
    %c0_i32_1 = arith.constant 0 : i32
    return %arg0, %c0_i32, %c0_i32_0 : i32, i32, i32
  }
  func.func @transform_9(%arg0: i32) -> (i32, i32, i32) {
    %c0_i32 = arith.constant 0 : i32
    %c0_i32_0 = arith.constant 0 : i32
    %c0_i32_1 = arith.constant 0 : i32
    return %arg0, %c0_i32, %c0_i32_0 : i32, i32, i32
  }
  func.func @transform_10(%arg0: i32) -> (i32, i32, i32) {
    %c0_i32 = arith.constant 0 : i32
    %c0_i32_0 = arith.constant 0 : i32
    %c0_i32_1 = arith.constant 0 : i32
    return %arg0, %c0_i32, %c0_i32_0 : i32, i32, i32
  }
  func.func @transform_11(%arg0: i32) -> (i32, i32, i32) {
    %c0_i32 = arith.constant 0 : i32
    %c0_i32_0 = arith.constant 0 : i32
    %c0_i32_1 = arith.constant 0 : i32
    return %arg0, %c0_i32, %c0_i32_0 : i32, i32, i32
  }
  func.func @transform_12(%arg0: i32) -> (i32, i32, i32) {
    %c0_i32 = arith.constant 0 : i32
    %c0_i32_0 = arith.constant 0 : i32
    %c0_i32_1 = arith.constant 0 : i32
    return %arg0, %c0_i32, %c0_i32_0 : i32, i32, i32
  }
  func.func @transform_13(%arg0: i32) -> (i32, i32, i32) {
    %c0_i32 = arith.constant 0 : i32
    %c0_i32_0 = arith.constant 0 : i32
    %c0_i32_1 = arith.constant 0 : i32
    return %arg0, %c0_i32, %c0_i32_0 : i32, i32, i32
  }
  func.func @transform_14(%arg0: i32) -> (i32, i32, i32) {
    %c0_i32 = arith.constant 0 : i32
    %c0_i32_0 = arith.constant 0 : i32
    %c0_i32_1 = arith.constant 0 : i32
    return %arg0, %c0_i32, %c0_i32_0 : i32, i32, i32
  }
  func.func @transform_15(%arg0: i32) -> (i32, i32, i32) {
    %c0_i32 = arith.constant 0 : i32
    %c0_i32_0 = arith.constant 0 : i32
    %c0_i32_1 = arith.constant 0 : i32
    return %arg0, %c0_i32, %c0_i32_0 : i32, i32, i32
  }
  func.func @transform_16(%arg0: i32) -> (i32, i32) {
    %c0_i32 = arith.constant 0 : i32
    %c0_i32_0 = arith.constant 0 : i32
    %c0_i32_1 = arith.constant 0 : i32
    return %c0_i32, %c0_i32_0 : i32, i32
  }
  func.func @transform_17(%arg0: i32) -> (i32, i32) {
    %c0_i32 = arith.constant 0 : i32
    %c0_i32_0 = arith.constant 0 : i32
    %c0_i32_1 = arith.constant 0 : i32
    return %c0_i32, %c0_i32_0 : i32, i32
  }
  func.func @transform_18(%arg0: i32) -> (i32, i32) {
    %c0_i32 = arith.constant 0 : i32
    %c0_i32_0 = arith.constant 0 : i32
    %c0_i32_1 = arith.constant 0 : i32
    return %c0_i32, %c0_i32_0 : i32, i32
  }
  func.func @transform_19(%arg0: i32) -> (i32, i32) {
    %c0_i32 = arith.constant 0 : i32
    %c0_i32_0 = arith.constant 0 : i32
    %c0_i32_1 = arith.constant 0 : i32
    return %c0_i32, %c0_i32_0 : i32, i32
  }
  func.func @transform_20(%arg0: i32) -> (i32, i32) {
    %c0_i32 = arith.constant 0 : i32
    %c0_i32_0 = arith.constant 0 : i32
    %c0_i32_1 = arith.constant 0 : i32
    return %c0_i32, %c0_i32_0 : i32, i32
  }
  func.func @transform_21(%arg0: i32) -> (i32, i32) {
    %c0_i32 = arith.constant 0 : i32
    %c0_i32_0 = arith.constant 0 : i32
    %c0_i32_1 = arith.constant 0 : i32
    return %c0_i32, %c0_i32_0 : i32, i32
  }
}

</mosaic_0001>

<llo_original>
// kernel: bert_sst2_forward.1
$region0: #{bert_sst2_forward.1}
  #allocation0 [shape = 'u32[]', space=smem, size = 0x4, offset = 0x4, fixed_abs, tag = 'smem constant byte address 0x4 - core index']
  #allocation1 [shape = 'u32[72,128]{1,0:T(1,128)}', space=vmem, size = 0x9000, scoped, tag = 'internal scratch']
  %s0 = inlined_call_operand.vmem [shape: f32[16,32], index: 0, kind: input, shape index: {}]
  %s1 = inlined_call_operand.vmem [shape: f32[2,1,8], index: 1, kind: input, shape index: {}]
  %s2 = inlined_call_operand.vmem [shape: f32[1,32], index: 2, kind: input, shape index: {}]
  %s3 = inlined_call_operand.vmem [shape: f32[1,32], index: 3, kind: input, shape index: {}]
  %s4 = inlined_call_operand.vmem [shape: bf16[2,32,96], index: 4, kind: input, shape index: {}]
  %s5 = inlined_call_operand.vmem [shape: f32[2,1,96], index: 5, kind: input, shape index: {}]
  %s6 = inlined_call_operand.vmem [shape: bf16[2,32,32], index: 6, kind: input, shape index: {}]
  %s7 = inlined_call_operand.vmem [shape: f32[2,1,32], index: 7, kind: input, shape index: {}]
  %s8 = inlined_call_operand.vmem [shape: f32[2,1,32], index: 8, kind: input, shape index: {}]
  %s9 = inlined_call_operand.vmem [shape: f32[2,1,32], index: 9, kind: input, shape index: {}]
  %s10 = inlined_call_operand.vmem [shape: bf16[2,32,64], index: 10, kind: input, shape index: {}]
  %s11 = inlined_call_operand.vmem [shape: f32[2,1,64], index: 11, kind: input, shape index: {}]
  %s12 = inlined_call_operand.vmem [shape: bf16[2,64,32], index: 12, kind: input, shape index: {}]
  %s13 = inlined_call_operand.vmem [shape: f32[2,1,32], index: 13, kind: input, shape index: {}]
  %s14 = inlined_call_operand.vmem [shape: f32[2,1,32], index: 14, kind: input, shape index: {}]
  %s15 = inlined_call_operand.vmem [shape: f32[2,1,32], index: 15, kind: input, shape index: {}]
  %s16 = inlined_call_operand.vmem [shape: bf16[32,32], index: 16, kind: input, shape index: {}]
  %s17 = inlined_call_operand.vmem [shape: f32[1,32], index: 17, kind: input, shape index: {}]
  %s18 = inlined_call_operand.vmem [shape: bf16[32,128], index: 18, kind: input, shape index: {}]
  %s19 = inlined_call_operand.vmem [shape: f32[1,128], index: 19, kind: input, shape index: {}]
  %s20 = inlined_call_operand.hbm [shape: f32[16,32], index: 20, kind: output, shape index: {0}]
  %s21 = inlined_call_operand.hbm [shape: f32[2,128], index: 21, kind: output, shape index: {1}]
  %22 = xla_tuple %s20, %s21
  %s23 = sld [smem:[#allocation0]]
  $region129: #{bert_sst2_forward.1} parent=0
    _
  %s25 = ssub.s32 1, %s23
  %s26 = scalar_select 0, %s25, %s23
  $region1: #{bert_sst2_forward.1} parent=0
    #allocation2 [shape = 'u8[8192]{0}', space=vmem, size = 0x2000, scoped, tag = 'output window, operand 0, single buffered']
    #allocation3 [shape = 's32[2]{0}', space=sflag, size = 0x8, scoped, tag = 'scoped memory for bert_sst2_forward.1']
    #allocation4 [shape = 'u8[1024]{0}', space=vmem, size = 0x400, scoped, tag = 'output window, operand 1, single buffered']
    #allocation5 [shape = 's32[1]{0}', space=sflag, size = 0x4, scoped, tag = 'scoped memory for bert_sst2_forward.1']
    %27 = vsyncpa [#allocation3], 0
    %28 = vsyncpa [#allocation5], 0
    loop: start=0, step=1, limit=4
    $region2: #{bert_sst2_forward.1} parent=1 // loop_pre_header
      _
    $region3: #{bert_sst2_forward.1} parent=1 // loop_header
      %s30 = sphi 0, %s34
      %p31 = scmp.ge.s32.totalorder %s30, 4
      %s38 = sphi 0, %s38
      %s40 = sphi 0, %s38
      %s41 = sphi 0, %s40
      %s55 = sphi 0, %s41
      %s59 = sphi 0, %s59
      %s61 = sphi 0, %s59
      %s62 = sphi 0, %s61
      %s76 = sphi 0, %s62
      %s80 = sphi 0, %s80
      %s82 = sphi 0, %s80
      %s83 = sphi 0, %s82
      %s97 = sphi 0, %s83
      %s101 = sphi 0, %s101
      %s103 = sphi 0, %s101
      %s104 = sphi 0, %s103
      %s118 = sphi 0, %s104
      %s124 = sphi 0, %s126
      %s127 = sphi 0, %s124
      %s128 = sphi 0, %s127
      %s144 = sphi 0, %s128
      %s150 = sphi 0, %s152
      %s153 = sphi 0, %s150
      %s154 = sphi 0, %s153
      %s170 = sphi 0, %s154
      %s176 = sphi 0, %s178
      %s179 = sphi 0, %s176
      %s180 = sphi 0, %s179
      %s196 = sphi 0, %s180
      %s202 = sphi 0, %s204
      %s205 = sphi 0, %s202
      %s206 = sphi 0, %s205
      %s222 = sphi 0, %s206
      %s228 = sphi 0, %s230
      %s231 = sphi 0, %s228
      %s232 = sphi 0, %s231
      %s248 = sphi 0, %s232
      %s254 = sphi 0, %s256
      %s257 = sphi 0, %s254
      %s258 = sphi 0, %s257
      %s274 = sphi 0, %s258
      %s280 = sphi 0, %s282
      %s283 = sphi 0, %s280
      %s284 = sphi 0, %s283
      %s300 = sphi 0, %s284
      %s306 = sphi 0, %s308
      %s309 = sphi 0, %s306
      %s310 = sphi 0, %s309
      %s326 = sphi 0, %s310
      %s332 = sphi 0, %s334
      %s335 = sphi 0, %s332
      %s336 = sphi 0, %s335
      %s352 = sphi 0, %s336
      %s358 = sphi 0, %s360
      %s361 = sphi 0, %s358
      %s362 = sphi 0, %s361
      %s378 = sphi 0, %s362
      %s384 = sphi 0, %s386
      %s387 = sphi 0, %s384
      %s388 = sphi 0, %s387
      %s404 = sphi 0, %s388
      %s410 = sphi 0, %s412
      %s413 = sphi 0, %s410
      %s414 = sphi 0, %s413
      %s430 = sphi 0, %s414
      %s434 = sphi 0, %s434
      %s436 = sphi 0, %s434
      %s437 = sphi 0, %s436
      %s451 = sphi 0, %s437
      %s455 = sphi 0, %s455
      %s457 = sphi 0, %s455
      %s458 = sphi 0, %s457
      %s472 = sphi 0, %s458
      %s476 = sphi 0, %s476
      %s478 = sphi 0, %s476
      %s479 = sphi 0, %s478
      %s493 = sphi 0, %s479
      %s497 = sphi 0, %s497
      %s499 = sphi 0, %s497
      %s500 = sphi 0, %s499
      %s514 = sphi 0, %s500
      %s518 = sphi 0, %s518
      %s520 = sphi 0, %s518
      %s521 = sphi 0, %s520
      %s535 = sphi 0, %s521
      %s539 = sphi 0, %s539
      %s541 = sphi 0, %s539
      %s542 = sphi 0, %s541
      %s556 = sphi 0, %s542
    $region4: #{bert_sst2_forward.1} parent=1 // loop_header_branch
      %33 = sbr.rel (%p31) target = $region8
    $region5: #{bert_sst2_forward.1} parent=1 // loop_body
      %s35 = ssub.s32 %s30, 1
      %s36 = ssub.s32 %s30, 2
      %s37 = sadd.s32 %s30, 1
      %s39 = sadd.s32 %s38, 1
      %p42 = scmp.eq.s32.totalorder %s30, 1
      %p43 = scmp.ne.s32.totalorder %s38, %s40
      %p44 = scmp.eq.s32.totalorder %s30, 0
      %p45 = por %p43, %p44
      %p46 = scmp.ne.s32.totalorder %s38, %s40
      %p47 = scmp.eq.s32.totalorder %s35, 1
      %p48 = por %p46, %p47
      %p49 = scmp.ne.s32.totalorder %s40, %s41
      %p50 = scmp.eq.s32.totalorder %s35, 0
      %p51 = por %p49, %p50
      %p52 = scmp.ne.s32.totalorder %s40, %s41
      %p53 = scmp.eq.s32.totalorder %s36, 1
      %p54 = por %p52, %p53
      %p56 = scmp.ne.s32.totalorder %s41, %s55
      %p57 = scmp.eq.s32.totalorder %s36, 0
      %p58 = por %p56, %p57
      %s60 = sadd.s32 %s59, 1
      %p63 = scmp.eq.s32.totalorder %s30, 1
      %p64 = scmp.ne.s32.totalorder %s59, %s61
      %p65 = scmp.eq.s32.totalorder %s30, 0
      %p66 = por %p64, %p65
      %p67 = scmp.ne.s32.totalorder %s59, %s61
      %p68 = scmp.eq.s32.totalorder %s35, 1
      %p69 = por %p67, %p68
      %p70 = scmp.ne.s32.totalorder %s61, %s62
      %p71 = scmp.eq.s32.totalorder %s35, 0
      %p72 = por %p70, %p71
      %p73 = scmp.ne.s32.totalorder %s61, %s62
      %p74 = scmp.eq.s32.totalorder %s36, 1
      %p75 = por %p73, %p74
      %p77 = scmp.ne.s32.totalorder %s62, %s76
      %p78 = scmp.eq.s32.totalorder %s36, 0
      %p79 = por %p77, %p78
      %s81 = sadd.s32 %s80, 1
      %p84 = scmp.eq.s32.totalorder %s30, 1
      %p85 = scmp.ne.s32.totalorder %s80, %s82
      %p86 = scmp.eq.s32.totalorder %s30, 0
      %p87 = por %p85, %p86
      %p88 = scmp.ne.s32.totalorder %s80, %s82
      %p89 = scmp.eq.s32.totalorder %s35, 1
      %p90 = por %p88, %p89
      %p91 = scmp.ne.s32.totalorder %s82, %s83
      %p92 = scmp.eq.s32.totalorder %s35, 0
      %p93 = por %p91, %p92
      %p94 = scmp.ne.s32.totalorder %s82, %s83
      %p95 = scmp.eq.s32.totalorder %s36, 1
      %p96 = por %p94, %p95
      %p98 = scmp.ne.s32.totalorder %s83, %s97
      %p99 = scmp.eq.s32.totalorder %s36, 0
      %p100 = por %p98, %p99
      %s102 = sadd.s32 %s101, 1
      %p105 = scmp.eq.s32.totalorder %s30, 1
      %p106 = scmp.ne.s32.totalorder %s101, %s103
      %p107 = scmp.eq.s32.totalorder %s30, 0
      %p108 = por %p106, %p107
      %p109 = scmp.ne.s32.totalorder %s101, %s103
      %p110 = scmp.eq.s32.totalorder %s35, 1
      %p111 = por %p109, %p110
      %p112 = scmp.ne.s32.totalorder %s103, %s104
      %p113 = scmp.eq.s32.totalorder %s35, 0
      %p114 = por %p112, %p113
      %p115 = scmp.ne.s32.totalorder %s103, %s104
      %p116 = scmp.eq.s32.totalorder %s36, 1
      %p117 = por %p115, %p116
      %p119 = scmp.ne.s32.totalorder %s104, %s118
      %p120 = scmp.eq.s32.totalorder %s36, 0
      %p121 = por %p119, %p120
      %s122 = ssub.s32 %s30, %s37
      %p123 = scmp.eq.s32.totalorder %s122, 0
      %s125 = sadd.s32 %s124, 1
      %s126 = scalar_select %p123, %s124, %s125
      %p129 = pneg %p123
      %p130 = scmp.eq.s32.totalorder %s30, 1
      %p131 = por %p129, %p130
      %p132 = scmp.ne.s32.totalorder %s124, %s127
      %p133 = scmp.eq.s32.totalorder %s30, 0
      %p134 = por %p132, %p133
      %p135 = scmp.ne.s32.totalorder %s124, %s127
      %p136 = scmp.eq.s32.totalorder %s35, 1
      %p137 = por %p135, %p136
      %p138 = scmp.ne.s32.totalorder %s127, %s128
      %p139 = scmp.eq.s32.totalorder %s35, 0
      %p140 = por %p138, %p139
      %p141 = scmp.ne.s32.totalorder %s127, %s128
      %p142 = scmp.eq.s32.totalorder %s36, 1
      %p143 = por %p141, %p142
      %p145 = scmp.ne.s32.totalorder %s128, %s144
      %p146 = scmp.eq.s32.totalorder %s36, 0
      %p147 = por %p145, %p146
      %s148 = ssub.s32 %s30, %s37
      %p149 = scmp.eq.s32.totalorder %s148, 0
      %s151 = sadd.s32 %s150, 1
      %s152 = scalar_select %p149, %s150, %s151
      %p155 = pneg %p149
      %p156 = scmp.eq.s32.totalorder %s30, 1
      %p157 = por %p155, %p156
      %p158 = scmp.ne.s32.totalorder %s150, %s153
      %p159 = scmp.eq.s32.totalorder %s30, 0
      %p160 = por %p158, %p159
      %p161 = scmp.ne.s32.totalorder %s150, %s153
      %p162 = scmp.eq.s32.totalorder %s35, 1
      %p163 = por %p161, %p162
      %p164 = scmp.ne.s32.totalorder %s153, %s154
      %p165 = scmp.eq.s32.totalorder %s35, 0
      %p166 = por %p164, %p165
      %p167 = scmp.ne.s32.totalorder %s153, %s154
      %p168 = scmp.eq.s32.totalorder %s36, 1
      %p169 = por %p167, %p168
      %p171 = scmp.ne.s32.totalorder %s154, %s170
      %p172 = scmp.eq.s32.totalorder %s36, 0
      %p173 = por %p171, %p172
      %s174 = ssub.s32 %s30, %s37
      %p175 = scmp.eq.s32.totalorder %s174, 0
      %s177 = sadd.s32 %s176, 1
      %s178 = scalar_select %p175, %s176, %s177
      %p181 = pneg %p175
      %p182 = scmp.eq.s32.totalorder %s30, 1
      %p183 = por %p181, %p182
      %p184 = scmp.ne.s32.totalorder %s176, %s179
      %p185 = scmp.eq.s32.totalorder %s30, 0
      %p186 = por %p184, %p185
      %p187 = scmp.ne.s32.totalorder %s176, %s179
      %p188 = scmp.eq.s32.totalorder %s35, 1
      %p189 = por %p187, %p188
      %p190 = scmp.ne.s32.totalorder %s179, %s180
      %p191 = scmp.eq.s32.totalorder %s35, 0
      %p192 = por %p190, %p191
      %p193 = scmp.ne.s32.totalorder %s179, %s180
      %p194 = scmp.eq.s32.totalorder %s36, 1
      %p195 = por %p193, %p194
      %p197 = scmp.ne.s32.totalorder %s180, %s196
      %p198 = scmp.eq.s32.totalorder %s36, 0
      %p199 = por %p197, %p198
      %s200 = ssub.s32 %s30, %s37
      %p201 = scmp.eq.s32.totalorder %s200, 0
      %s203 = sadd.s32 %s202, 1
      %s204 = scalar_select %p201, %s202, %s203
      %p207 = pneg %p201
      %p208 = scmp.eq.s32.totalorder %s30, 1
      %p209 = por %p207, %p208
      %p210 = scmp.ne.s32.totalorder %s202, %s205
      %p211 = scmp.eq.s32.totalorder %s30, 0
      %p212 = por %p210, %p211
      %p213 = scmp.ne.s32.totalorder %s202, %s205
      %p214 = scmp.eq.s32.totalorder %s35, 1
      %p215 = por %p213, %p214
      %p216 = scmp.ne.s32.totalorder %s205, %s206
      %p217 = scmp.eq.s32.totalorder %s35, 0
      %p218 = por %p216, %p217
      %p219 = scmp.ne.s32.totalorder %s205, %s206
      %p220 = scmp.eq.s32.totalorder %s36, 1
      %p221 = por %p219, %p220
      %p223 = scmp.ne.s32.totalorder %s206, %s222
      %p224 = scmp.eq.s32.totalorder %s36, 0
      %p225 = por %p223, %p224
      %s226 = ssub.s32 %s30, %s37
      %p227 = scmp.eq.s32.totalorder %s226, 0
      %s229 = sadd.s32 %s228, 1
      %s230 = scalar_select %p227, %s228, %s229
      %p233 = pneg %p227
      %p234 = scmp.eq.s32.totalorder %s30, 1
      %p235 = por %p233, %p234
      %p236 = scmp.ne.s32.totalorder %s228, %s231
      %p237 = scmp.eq.s32.totalorder %s30, 0
      %p238 = por %p236, %p237
      %p239 = scmp.ne.s32.totalorder %s228, %s231
      %p240 = scmp.eq.s32.totalorder %s35, 1
      %p241 = por %p239, %p240
      %p242 = scmp.ne.s32.totalorder %s231, %s232
      %p243 = scmp.eq.s32.totalorder %s35, 0
      %p244 = por %p242, %p243
      %p245 = scmp.ne.s32.totalorder %s231, %s232
      %p246 = scmp.eq.s32.totalorder %s36, 1
      %p247 = por %p245, %p246
      %p249 = scmp.ne.s32.totalorder %s232, %s248
      %p250 = scmp.eq.s32.totalorder %s36, 0
      %p251 = por %p249, %p250
      %s252 = ssub.s32 %s30, %s37
      %p253 = scmp.eq.s32.totalorder %s252, 0
      %s255 = sadd.s32 %s254, 1
      %s256 = scalar_select %p253, %s254, %s255
      %p259 = pneg %p253
      %p260 = scmp.eq.s32.totalorder %s30, 1
      %p261 = por %p259, %p260
      %p262 = scmp.ne.s32.totalorder %s254, %s257
      %p263 = scmp.eq.s32.totalorder %s30, 0
      %p264 = por %p262, %p263
      %p265 = scmp.ne.s32.totalorder %s254, %s257
      %p266 = scmp.eq.s32.totalorder %s35, 1
      %p267 = por %p265, %p266
      %p268 = scmp.ne.s32.totalorder %s257, %s258
      %p269 = scmp.eq.s32.totalorder %s35, 0
      %p270 = por %p268, %p269
      %p271 = scmp.ne.s32.totalorder %s257, %s258
      %p272 = scmp.eq.s32.totalorder %s36, 1
      %p273 = por %p271, %p272
      %p275 = scmp.ne.s32.totalorder %s258, %s274
      %p276 = scmp.eq.s32.totalorder %s36, 0
      %p277 = por %p275, %p276
      %s278 = ssub.s32 %s30, %s37
      %p279 = scmp.eq.s32.totalorder %s278, 0
      %s281 = sadd.s32 %s280, 1
      %s282 = scalar_select %p279, %s280, %s281
      %p285 = pneg %p279
      %p286 = scmp.eq.s32.totalorder %s30, 1
      %p287 = por %p285, %p286
      %p288 = scmp.ne.s32.totalorder %s280, %s283
      %p289 = scmp.eq.s32.totalorder %s30, 0
      %p290 = por %p288, %p289
      %p291 = scmp.ne.s32.totalorder %s280, %s283
      %p292 = scmp.eq.s32.totalorder %s35, 1
      %p293 = por %p291, %p292
      %p294 = scmp.ne.s32.totalorder %s283, %s284
      %p295 = scmp.eq.s32.totalorder %s35, 0
      %p296 = por %p294, %p295
      %p297 = scmp.ne.s32.totalorder %s283, %s284
      %p298 = scmp.eq.s32.totalorder %s36, 1
      %p299 = por %p297, %p298
      %p301 = scmp.ne.s32.totalorder %s284, %s300
      %p302 = scmp.eq.s32.totalorder %s36, 0
      %p303 = por %p301, %p302
      %s304 = ssub.s32 %s30, %s37
      %p305 = scmp.eq.s32.totalorder %s304, 0
      %s307 = sadd.s32 %s306, 1
      %s308 = scalar_select %p305, %s306, %s307
      %p311 = pneg %p305
      %p312 = scmp.eq.s32.totalorder %s30, 1
      %p313 = por %p311, %p312
      %p314 = scmp.ne.s32.totalorder %s306, %s309
      %p315 = scmp.eq.s32.totalorder %s30, 0
      %p316 = por %p314, %p315
      %p317 = scmp.ne.s32.totalorder %s306, %s309
      %p318 = scmp.eq.s32.totalorder %s35, 1
      %p319 = por %p317, %p318
      %p320 = scmp.ne.s32.totalorder %s309, %s310
      %p321 = scmp.eq.s32.totalorder %s35, 0
      %p322 = por %p320, %p321
      %p323 = scmp.ne.s32.totalorder %s309, %s310
      %p324 = scmp.eq.s32.totalorder %s36, 1
      %p325 = por %p323, %p324
      %p327 = scmp.ne.s32.totalorder %s310, %s326
      %p328 = scmp.eq.s32.totalorder %s36, 0
      %p329 = por %p327, %p328
      %s330 = ssub.s32 %s30, %s37
      %p331 = scmp.eq.s32.totalorder %s330, 0
      %s333 = sadd.s32 %s332, 1
      %s334 = scalar_select %p331, %s332, %s333
      %p337 = pneg %p331
      %p338 = scmp.eq.s32.totalorder %s30, 1
      %p339 = por %p337, %p338
      %p340 = scmp.ne.s32.totalorder %s332, %s335
      %p341 = scmp.eq.s32.totalorder %s30, 0
      %p342 = por %p340, %p341
      %p343 = scmp.ne.s32.totalorder %s332, %s335
      %p344 = scmp.eq.s32.totalorder %s35, 1
      %p345 = por %p343, %p344
      %p346 = scmp.ne.s32.totalorder %s335, %s336
      %p347 = scmp.eq.s32.totalorder %s35, 0
      %p348 = por %p346, %p347
      %p349 = scmp.ne.s32.totalorder %s335, %s336
      %p350 = scmp.eq.s32.totalorder %s36, 1
      %p351 = por %p349, %p350
      %p353 = scmp.ne.s32.totalorder %s336, %s352
      %p354 = scmp.eq.s32.totalorder %s36, 0
      %p355 = por %p353, %p354
      %s356 = ssub.s32 %s30, %s37
      %p357 = scmp.eq.s32.totalorder %s356, 0
      %s359 = sadd.s32 %s358, 1
      %s360 = scalar_select %p357, %s358, %s359
      %p363 = pneg %p357
      %p364 = scmp.eq.s32.totalorder %s30, 1
      %p365 = por %p363, %p364
      %p366 = scmp.ne.s32.totalorder %s358, %s361
      %p367 = scmp.eq.s32.totalorder %s30, 0
      %p368 = por %p366, %p367
      %p369 = scmp.ne.s32.totalorder %s358, %s361
      %p370 = scmp.eq.s32.totalorder %s35, 1
      %p371 = por %p369, %p370
      %p372 = scmp.ne.s32.totalorder %s361, %s362
      %p373 = scmp.eq.s32.totalorder %s35, 0
      %p374 = por %p372, %p373
      %p375 = scmp.ne.s32.totalorder %s361, %s362
      %p376 = scmp.eq.s32.totalorder %s36, 1
      %p377 = por %p375, %p376
      %p379 = scmp.ne.s32.totalorder %s362, %s378
      %p380 = scmp.eq.s32.totalorder %s36, 0
      %p381 = por %p379, %p380
      %s382 = ssub.s32 %s30, %s37
      %p383 = scmp.eq.s32.totalorder %s382, 0
      %s385 = sadd.s32 %s384, 1
      %s386 = scalar_select %p383, %s384, %s385
      %p389 = pneg %p383
      %p390 = scmp.eq.s32.totalorder %s30, 1
      %p391 = por %p389, %p390
      %p392 = scmp.ne.s32.totalorder %s384, %s387
      %p393 = scmp.eq.s32.totalorder %s30, 0
      %p394 = por %p392, %p393
      %p395 = scmp.ne.s32.totalorder %s384, %s387
      %p396 = scmp.eq.s32.totalorder %s35, 1
      %p397 = por %p395, %p396
      %p398 = scmp.ne.s32.totalorder %s387, %s388
      %p399 = scmp.eq.s32.totalorder %s35, 0
      %p400 = por %p398, %p399
      %p401 = scmp.ne.s32.totalorder %s387, %s388
      %p402 = scmp.eq.s32.totalorder %s36, 1
      %p403 = por %p401, %p402
      %p405 = scmp.ne.s32.totalorder %s388, %s404
      %p406 = scmp.eq.s32.totalorder %s36, 0
      %p407 = por %p405, %p406
      %s408 = ssub.s32 %s30, %s37
      %p409 = scmp.eq.s32.totalorder %s408, 0
      %s411 = sadd.s32 %s410, 1
      %s412 = scalar_select %p409, %s410, %s411
      %p415 = pneg %p409
      %p416 = scmp.eq.s32.totalorder %s30, 1
      %p417 = por %p415, %p416
      %p418 = scmp.ne.s32.totalorder %s410, %s413
      %p419 = scmp.eq.s32.totalorder %s30, 0
      %p420 = por %p418, %p419
      %p421 = scmp.ne.s32.totalorder %s410, %s413
      %p422 = scmp.eq.s32.totalorder %s35, 1
      %p423 = por %p421, %p422
      %p424 = scmp.ne.s32.totalorder %s413, %s414
      %p425 = scmp.eq.s32.totalorder %s35, 0
      %p426 = por %p424, %p425
      %p427 = scmp.ne.s32.totalorder %s413, %s414
      %p428 = scmp.eq.s32.totalorder %s36, 1
      %p429 = por %p427, %p428
      %p431 = scmp.ne.s32.totalorder %s414, %s430
      %p432 = scmp.eq.s32.totalorder %s36, 0
      %p433 = por %p431, %p432
      %s435 = sadd.s32 %s434, 1
      %p438 = scmp.eq.s32.totalorder %s30, 1
      %p439 = scmp.ne.s32.totalorder %s434, %s436
      %p440 = scmp.eq.s32.totalorder %s30, 0
      %p441 = por %p439, %p440
      %p442 = scmp.ne.s32.totalorder %s434, %s436
      %p443 = scmp.eq.s32.totalorder %s35, 1
      %p444 = por %p442, %p443
      %p445 = scmp.ne.s32.totalorder %s436, %s437
      %p446 = scmp.eq.s32.totalorder %s35, 0
      %p447 = por %p445, %p446
      %p448 = scmp.ne.s32.totalorder %s436, %s437
      %p449 = scmp.eq.s32.totalorder %s36, 1
      %p450 = por %p448, %p449
      %p452 = scmp.ne.s32.totalorder %s437, %s451
      %p453 = scmp.eq.s32.totalorder %s36, 0
      %p454 = por %p452, %p453
      %s456 = sadd.s32 %s455, 1
      %p459 = scmp.eq.s32.totalorder %s30, 1
      %p460 = scmp.ne.s32.totalorder %s455, %s457
      %p461 = scmp.eq.s32.totalorder %s30, 0
      %p462 = por %p460, %p461
      %p463 = scmp.ne.s32.totalorder %s455, %s457
      %p464 = scmp.eq.s32.totalorder %s35, 1
      %p465 = por %p463, %p464
      %p466 = scmp.ne.s32.totalorder %s457, %s458
      %p467 = scmp.eq.s32.totalorder %s35, 0
      %p468 = por %p466, %p467
      %p469 = scmp.ne.s32.totalorder %s457, %s458
      %p470 = scmp.eq.s32.totalorder %s36, 1
      %p471 = por %p469, %p470
      %p473 = scmp.ne.s32.totalorder %s458, %s472
      %p474 = scmp.eq.s32.totalorder %s36, 0
      %p475 = por %p473, %p474
      %s477 = sadd.s32 %s476, 1
      %p480 = scmp.eq.s32.totalorder %s30, 1
      %p481 = scmp.ne.s32.totalorder %s476, %s478
      %p482 = scmp.eq.s32.totalorder %s30, 0
      %p483 = por %p481, %p482
      %p484 = scmp.ne.s32.totalorder %s476, %s478
      %p485 = scmp.eq.s32.totalorder %s35, 1
      %p486 = por %p484, %p485
      %p487 = scmp.ne.s32.totalorder %s478, %s479
      %p488 = scmp.eq.s32.totalorder %s35, 0
      %p489 = por %p487, %p488
      %p490 = scmp.ne.s32.totalorder %s478, %s479
      %p491 = scmp.eq.s32.totalorder %s36, 1
      %p492 = por %p490, %p491
      %p494 = scmp.ne.s32.totalorder %s479, %s493
      %p495 = scmp.eq.s32.totalorder %s36, 0
      %p496 = por %p494, %p495
      %s498 = sadd.s32 %s497, 1
      %p501 = scmp.eq.s32.totalorder %s30, 1
      %p502 = scmp.ne.s32.totalorder %s497, %s499
      %p503 = scmp.eq.s32.totalorder %s30, 0
      %p504 = por %p502, %p503
      %p505 = scmp.ne.s32.totalorder %s497, %s499
      %p506 = scmp.eq.s32.totalorder %s35, 1
      %p507 = por %p505, %p506
      %p508 = scmp.ne.s32.totalorder %s499, %s500
      %p509 = scmp.eq.s32.totalorder %s35, 0
      %p510 = por %p508, %p509
      %p511 = scmp.ne.s32.totalorder %s499, %s500
      %p512 = scmp.eq.s32.totalorder %s36, 1
      %p513 = por %p511, %p512
      %p515 = scmp.ne.s32.totalorder %s500, %s514
      %p516 = scmp.eq.s32.totalorder %s36, 0
      %p517 = por %p515, %p516
      %s519 = sadd.s32 %s518, 1
      %p522 = scmp.eq.s32.totalorder %s30, 1
      %p523 = scmp.ne.s32.totalorder %s518, %s520
      %p524 = scmp.eq.s32.totalorder %s30, 0
      %p525 = por %p523, %p524
      %p526 = scmp.ne.s32.totalorder %s518, %s520
      %p527 = scmp.eq.s32.totalorder %s35, 1
      %p528 = por %p526, %p527
      %p529 = scmp.ne.s32.totalorder %s520, %s521
      %p530 = scmp.eq.s32.totalorder %s35, 0
      %p531 = por %p529, %p530
      %p532 = scmp.ne.s32.totalorder %s520, %s521
      %p533 = scmp.eq.s32.totalorder %s36, 1
      %p534 = por %p532, %p533
      %p536 = scmp.ne.s32.totalorder %s521, %s535
      %p537 = scmp.eq.s32.totalorder %s36, 0
      %p538 = por %p536, %p537
      %s540 = sadd.s32 %s539, 1
      %p543 = scmp.eq.s32.totalorder %s30, 1
      %p544 = scmp.ne.s32.totalorder %s539, %s541
      %p545 = scmp.eq.s32.totalorder %s30, 0
      %p546 = por %p544, %p545
      %p547 = scmp.ne.s32.totalorder %s539, %s541
      %p548 = scmp.eq.s32.totalorder %s35, 1
      %p549 = por %p547, %p548
      %p550 = scmp.ne.s32.totalorder %s541, %s542
      %p551 = scmp.eq.s32.totalorder %s35, 0
      %p552 = por %p550, %p551
      %p553 = scmp.ne.s32.totalorder %s541, %s542
      %p554 = scmp.eq.s32.totalorder %s36, 1
      %p555 = por %p553, %p554
      %p557 = scmp.ne.s32.totalorder %s542, %s556
      %p558 = scmp.eq.s32.totalorder %s36, 0
      %p559 = por %p557, %p558
      %p560 = scmp.le.s32.totalorder 1, %s30
      %p561 = scmp.lt.s32.totalorder %s30, 3
      %p562 = pnand %p560, %p561
      %p563 = pneg %p562
      // Predicated region
      $region9: #{bert_sst2_forward.1} parent=5 // pred_check
        _
      $region10: #{bert_sst2_forward.1} parent=5 // pred_check_branch
        %565 = sbr.rel (%p562) target = $region12
      $region11: #{bert_sst2_forward.1} parent=5 // pred_region
        %s566 = ssub.s32 %s30, 1
        // Predicated region
        $region13: #{bert_sst2_forward.1} parent=11 // pred_check
          %p567 = pneg %p51
        $region14: #{bert_sst2_forward.1} parent=11 // pred_check_branch
          %569 = sbr.rel (%p567) target = $region16
        $region15: #{bert_sst2_forward.1} parent=11 // pred_region
          _
        $region16: #{bert_sst2_forward.1} parent=11 // pred_fallthru
          _
        // Predicated region
        $region17: #{bert_sst2_forward.1} parent=11 // pred_check
          %p570 = pneg %p72
        $region18: #{bert_sst2_forward.1} parent=11 // pred_check_branch
          %572 = sbr.rel (%p570) target = $region20
        $region19: #{bert_sst2_forward.1} parent=11 // pred_region
          _
        $region20: #{bert_sst2_forward.1} parent=11 // pred_fallthru
          _
        // Predicated region
        $region21: #{bert_sst2_forward.1} parent=11 // pred_check
          %p573 = pneg %p93
        $region22: #{bert_sst2_forward.1} parent=11 // pred_check_branch
          %575 = sbr.rel (%p573) target = $region24
        $region23: #{bert_sst2_forward.1} parent=11 // pred_region
          _
        $region24: #{bert_sst2_forward.1} parent=11 // pred_fallthru
          _
        // Predicated region
        $region25: #{bert_sst2_forward.1} parent=11 // pred_check
          %p576 = pneg %p114
        $region26: #{bert_sst2_forward.1} parent=11 // pred_check_branch
          %578 = sbr.rel (%p576) target = $region28
        $region27: #{bert_sst2_forward.1} parent=11 // pred_region
          _
        $region28: #{bert_sst2_forward.1} parent=11 // pred_fallthru
          _
        // Predicated region
        $region29: #{bert_sst2_forward.1} parent=11 // pred_check
          %p579 = pneg %p447
        $region30: #{bert_sst2_forward.1} parent=11 // pred_check_branch
          %581 = sbr.rel (%p579) target = $region32
        $region31: #{bert_sst2_forward.1} parent=11 // pred_region
          _
        $region32: #{bert_sst2_forward.1} parent=11 // pred_fallthru
          _
        // Predicated region
        $region33: #{bert_sst2_forward.1} parent=11 // pred_check
          %p582 = pneg %p468
        $region34: #{bert_sst2_forward.1} parent=11 // pred_check_branch
          %584 = sbr.rel (%p582) target = $region36
        $region35: #{bert_sst2_forward.1} parent=11 // pred_region
          _
        $region36: #{bert_sst2_forward.1} parent=11 // pred_fallthru
          _
        // Predicated region
        $region37: #{bert_sst2_forward.1} parent=11 // pred_check
          %p585 = pneg %p489
        $region38: #{bert_sst2_forward.1} parent=11 // pred_check_branch
          %587 = sbr.rel (%p585) target = $region40
        $region39: #{bert_sst2_forward.1} parent=11 // pred_region
          _
        $region40: #{bert_sst2_forward.1} parent=11 // pred_fallthru
          _
        // Predicated region
        $region41: #{bert_sst2_forward.1} parent=11 // pred_check
          %p588 = pneg %p510
        $region42: #{bert_sst2_forward.1} parent=11 // pred_check_branch
          %590 = sbr.rel (%p588) target = $region44
        $region43: #{bert_sst2_forward.1} parent=11 // pred_region
          _
        $region44: #{bert_sst2_forward.1} parent=11 // pred_fallthru
          _
      $region12: #{bert_sst2_forward.1} parent=5 // pred_fallthru
        _
      %p591 = scmp.lt.s32.totalorder %s30, 2
      // Predicated region
      $region45: #{bert_sst2_forward.1} parent=5 // pred_check
        %p592 = pneg %p591
      $region46: #{bert_sst2_forward.1} parent=5 // pred_check_branch
        %594 = sbr.rel (%p592) target = $region48
      $region47: #{bert_sst2_forward.1} parent=5 // pred_region
        // Predicated region
        $region49: #{bert_sst2_forward.1} parent=47 // pred_check
          %p595 = pneg %p134
        $region50: #{bert_sst2_forward.1} parent=47 // pred_check_branch
          %597 = sbr.rel (%p595) target = $region52
        $region51: #{bert_sst2_forward.1} parent=47 // pred_region
          %p598 = scmp.lt.s32.totalorder %s30, 1
          %s599 = scalar_select %p598, %s30, 1
          %s600 = smul.addr %s599, 4
          %s601 = smul.addr %s600, 4
          %s602 = scalar_lea.vmem %s4, %s601
        $region52: #{bert_sst2_forward.1} parent=47 // pred_fallthru
          _
        // Predicated region
        $region53: #{bert_sst2_forward.1} parent=47 // pred_check
          %p603 = pneg %p160
        $region54: #{bert_sst2_forward.1} parent=47 // pred_check_branch
          %605 = sbr.rel (%p603) target = $region56
        $region55: #{bert_sst2_forward.1} parent=47 // pred_region
          %p606 = scmp.lt.s32.totalorder %s30, 1
          %s607 = scalar_select %p606, %s30, 1
          %s608 = scalar_lea.vmem %s5, %s607
        $region56: #{bert_sst2_forward.1} parent=47 // pred_fallthru
          _
        // Predicated region
        $region57: #{bert_sst2_forward.1} parent=47 // pred_check
          %p609 = pneg %p186
        $region58: #{bert_sst2_forward.1} parent=47 // pred_check_branch
          %611 = sbr.rel (%p609) target = $region60
        $region59: #{bert_sst2_forward.1} parent=47 // pred_region
          %p612 = scmp.lt.s32.totalorder %s30, 1
          %s613 = scalar_select %p612, %s30, 1
          %s614 = smul.addr %s613, 4
          %s615 = smul.addr %s614, 4
          %s616 = scalar_lea.vmem %s6, %s615
        $region60: #{bert_sst2_forward.1} parent=47 // pred_fallthru
          _
        // Predicated region
        $region61: #{bert_sst2_forward.1} parent=47 // pred_check
          %p617 = pneg %p212
        $region62: #{bert_sst2_forward.1} parent=47 // pred_check_branch
          %619 = sbr.rel (%p617) target = $region64
        $region63: #{bert_sst2_forward.1} parent=47 // pred_region
          %p620 = scmp.lt.s32.totalorder %s30, 1
          %s621 = scalar_select %p620, %s30, 1
          %s622 = scalar_lea.vmem %s7, %s621
        $region64: #{bert_sst2_forward.1} parent=47 // pred_fallthru
          _
        // Predicated region
        $region65: #{bert_sst2_forward.1} parent=47 // pred_check
          %p623 = pneg %p238
        $region66: #{bert_sst2_forward.1} parent=47 // pred_check_branch
          %625 = sbr.rel (%p623) target = $region68
        $region67: #{bert_sst2_forward.1} parent=47 // pred_region
          %p626 = scmp.lt.s32.totalorder %s30, 1
          %s627 = scalar_select %p626, %s30, 1
          %s628 = scalar_lea.vmem %s8, %s627
        $region68: #{bert_sst2_forward.1} parent=47 // pred_fallthru
          _
        // Predicated region
        $region69: #{bert_sst2_forward.1} parent=47 // pred_check
          %p629 = pneg %p264
        $region70: #{bert_sst2_forward.1} parent=47 // pred_check_branch
          %631 = sbr.rel (%p629) target = $region72
        $region71: #{bert_sst2_forward.1} parent=47 // pred_region
          %p632 = scmp.lt.s32.totalorder %s30, 1
          %s633 = scalar_select %p632, %s30, 1
          %s634 = scalar_lea.vmem %s9, %s633
        $region72: #{bert_sst2_forward.1} parent=47 // pred_fallthru
          _
        // Predicated region
        $region73: #{bert_sst2_forward.1} parent=47 // pred_check
          %p635 = pneg %p290
        $region74: #{bert_sst2_forward.1} parent=47 // pred_check_branch
          %637 = sbr.rel (%p635) target = $region76
        $region75: #{bert_sst2_forward.1} parent=47 // pred_region
          %p638 = scmp.lt.s32.totalorder %s30, 1
          %s639 = scalar_select %p638, %s30, 1
          %s640 = smul.addr %s639, 4
          %s641 = smul.addr %s640, 4
          %s642 = scalar_lea.vmem %s10, %s641
        $region76: #{bert_sst2_forward.1} parent=47 // pred_fallthru
          _
        // Predicated region
        $region77: #{bert_sst2_forward.1} parent=47 // pred_check
          %p643 = pneg %p316
        $region78: #{bert_sst2_forward.1} parent=47 // pred_check_branch
          %645 = sbr.rel (%p643) target = $region80
        $region79: #{bert_sst2_forward.1} parent=47 // pred_region
          %p646 = scmp.lt.s32.totalorder %s30, 1
          %s647 = scalar_select %p646, %s30, 1
          %s648 = scalar_lea.vmem %s11, %s647
        $region80: #{bert_sst2_forward.1} parent=47 // pred_fallthru
          _
        // Predicated region
        $region81: #{bert_sst2_forward.1} parent=47 // pred_check
          %p649 = pneg %p342
        $region82: #{bert_sst2_forward.1} parent=47 // pred_check_branch
          %651 = sbr.rel (%p649) target = $region84
        $region83: #{bert_sst2_forward.1} parent=47 // pred_region
          %p652 = scmp.lt.s32.totalorder %s30, 1
          %s653 = scalar_select %p652, %s30, 1
          %s654 = smul.addr %s653, 8
          %s655 = smul.addr %s654, 4
          %s656 = scalar_lea.vmem %s12, %s655
        $region84: #{bert_sst2_forward.1} parent=47 // pred_fallthru
          _
        // Predicated region
        $region85: #{bert_sst2_forward.1} parent=47 // pred_check
          %p657 = pneg %p368
        $region86: #{bert_sst2_forward.1} parent=47 // pred_check_branch
          %659 = sbr.rel (%p657) target = $region88
        $region87: #{bert_sst2_forward.1} parent=47 // pred_region
          %p660 = scmp.lt.s32.totalorder %s30, 1
          %s661 = scalar_select %p660, %s30, 1
          %s662 = scalar_lea.vmem %s13, %s661
        $region88: #{bert_sst2_forward.1} parent=47 // pred_fallthru
          _
        // Predicated region
        $region89: #{bert_sst2_forward.1} parent=47 // pred_check
          %p663 = pneg %p394
        $region90: #{bert_sst2_forward.1} parent=47 // pred_check_branch
          %665 = sbr.rel (%p663) target = $region92
        $region91: #{bert_sst2_forward.1} parent=47 // pred_region
          %p666 = scmp.lt.s32.totalorder %s30, 1
          %s667 = scalar_select %p666, %s30, 1
          %s668 = scalar_lea.vmem %s14, %s667
        $region92: #{bert_sst2_forward.1} parent=47 // pred_fallthru
          _
        // Predicated region
        $region93: #{bert_sst2_forward.1} parent=47 // pred_check
          %p669 = pneg %p420
        $region94: #{bert_sst2_forward.1} parent=47 // pred_check_branch
          %671 = sbr.rel (%p669) target = $region96
        $region95: #{bert_sst2_forward.1} parent=47 // pred_region
          %p672 = scmp.lt.s32.totalorder %s30, 1
          %s673 = scalar_select %p672, %s30, 1
          %s674 = scalar_lea.vmem %s15, %s673
        $region96: #{bert_sst2_forward.1} parent=47 // pred_fallthru
          _
      $region48: #{bert_sst2_forward.1} parent=5 // pred_fallthru
        _
      %p675 = scmp.le.s32.totalorder 1, %s30
      %p676 = scmp.lt.s32.totalorder %s30, 3
      %p677 = pnand %p675, %p676
      %p678 = pneg %p677
      // Predicated region
      $region97: #{bert_sst2_forward.1} parent=5 // pred_check
        _
      $region98: #{bert_sst2_forward.1} parent=5 // pred_check_branch
        %680 = sbr.rel (%p677) target = $region100
      $region99: #{bert_sst2_forward.1} parent=5 // pred_region
        %s681 = ssub.s32 %s30, 1
        %p682 = pneg %p51
        %p683 = pneg %p48
        %p684 = pneg %p72
        %p685 = pneg %p69
        %p686 = pneg %p93
        %p687 = pneg %p90
        %p688 = pneg %p114
        %p689 = pneg %p111
        %p690 = scmp.lt.s32.totalorder %s35, 1
        %s691 = scalar_select %p690, %s35, 1
        %s692 = smul.addr %s691, 4
        %s693 = smul.addr %s692, 4
        %s694 = scalar_lea.vmem %s4, %s693
        %p695 = pneg %p140
        %p696 = pneg %p137
        %p697 = scmp.lt.s32.totalorder %s35, 1
        %s698 = scalar_select %p697, %s35, 1
        %s699 = scalar_lea.vmem %s5, %s698
        %p700 = pneg %p166
        %p701 = pneg %p163
        %p702 = scmp.lt.s32.totalorder %s35, 1
        %s703 = scalar_select %p702, %s35, 1
        %s704 = smul.addr %s703, 4
        %s705 = smul.addr %s704, 4
        %s706 = scalar_lea.vmem %s6, %s705
        %p707 = pneg %p192
        %p708 = pneg %p189
        %p709 = scmp.lt.s32.totalorder %s35, 1
        %s710 = scalar_select %p709, %s35, 1
        %s711 = scalar_lea.vmem %s7, %s710
        %p712 = pneg %p218
        %p713 = pneg %p215
        %p714 = scmp.lt.s32.totalorder %s35, 1
        %s715 = scalar_select %p714, %s35, 1
        %s716 = scalar_lea.vmem %s8, %s715
        %p717 = pneg %p244
        %p718 = pneg %p241
        %p719 = scmp.lt.s32.totalorder %s35, 1
        %s720 = scalar_select %p719, %s35, 1
        %s721 = scalar_lea.vmem %s9, %s720
        %p722 = pneg %p270
        %p723 = pneg %p267
        %p724 = scmp.lt.s32.totalorder %s35, 1
        %s725 = scalar_select %p724, %s35, 1
        %s726 = smul.addr %s725, 4
        %s727 = smul.addr %s726, 4
        %s728 = scalar_lea.vmem %s10, %s727
        %p729 = pneg %p296
        %p730 = pneg %p293
        %p731 = scmp.lt.s32.totalorder %s35, 1
        %s732 = scalar_select %p731, %s35, 1
        %s733 = scalar_lea.vmem %s11, %s732
        %p734 = pneg %p322
        %p735 = pneg %p319
        %p736 = scmp.lt.s32.totalorder %s35, 1
        %s737 = scalar_select %p736, %s35, 1
        %s738 = smul.addr %s737, 8
        %s739 = smul.addr %s738, 4
        %s740 = scalar_lea.vmem %s12, %s739
        %p741 = pneg %p348
        %p742 = pneg %p345
        %p743 = scmp.lt.s32.totalorder %s35, 1
        %s744 = scalar_select %p743, %s35, 1
        %s745 = scalar_lea.vmem %s13, %s744
        %p746 = pneg %p374
        %p747 = pneg %p371
        %p748 = scmp.lt.s32.totalorder %s35, 1
        %s749 = scalar_select %p748, %s35, 1
        %s750 = scalar_lea.vmem %s14, %s749
        %p751 = pneg %p400
        %p752 = pneg %p397
        %p753 = scmp.lt.s32.totalorder %s35, 1
        %s754 = scalar_select %p753, %s35, 1
        %s755 = scalar_lea.vmem %s15, %s754
        %p756 = pneg %p426
        %p757 = pneg %p423
        %p758 = pneg %p447
        %p759 = pneg %p444
        %p760 = pneg %p468
        %p761 = pneg %p465
        %p762 = pneg %p489
        %p763 = pneg %p486
        %p764 = pneg %p510
        %p765 = pneg %p507
        %p766 = pneg %p531
        %p767 = pneg %p528
        %p768 = pneg %p552
        %p769 = pneg %p549
        %p770 = scmp.lt.s32.totalorder %s35, 1
        %s771 = scalar_select %p770, %s35, 1
        %s772 = smul.addr %s771, 4
        %s773 = smul.addr %s772, 4
        %s774 = scalar_lea.vmem %s4, %s773
        %p775 = scmp.lt.s32.totalorder %s35, 1
        %s776 = scalar_select %p775, %s35, 1
        %s777 = scalar_lea.vmem %s5, %s776
        %p778 = scmp.lt.s32.totalorder %s35, 1
        %s779 = scalar_select %p778, %s35, 1
        %s780 = smul.addr %s779, 4
        %s781 = smul.addr %s780, 4
        %s782 = scalar_lea.vmem %s6, %s781
        %p783 = scmp.lt.s32.totalorder %s35, 1
        %s784 = scalar_select %p783, %s35, 1
        %s785 = scalar_lea.vmem %s7, %s784
        %p786 = scmp.lt.s32.totalorder %s35, 1
        %s787 = scalar_select %p786, %s35, 1
        %s788 = scalar_lea.vmem %s8, %s787
        %p789 = scmp.lt.s32.totalorder %s35, 1
        %s790 = scalar_select %p789, %s35, 1
        %s791 = scalar_lea.vmem %s9, %s790
        %p792 = scmp.lt.s32.totalorder %s35, 1
        %s793 = scalar_select %p792, %s35, 1
        %s794 = smul.addr %s793, 4
        %s795 = smul.addr %s794, 4
        %s796 = scalar_lea.vmem %s10, %s795
        %p797 = scmp.lt.s32.totalorder %s35, 1
        %s798 = scalar_select %p797, %s35, 1
        %s799 = scalar_lea.vmem %s11, %s798
        %p800 = scmp.lt.s32.totalorder %s35, 1
        %s801 = scalar_select %p800, %s35, 1
        %s802 = smul.addr %s801, 8
        %s803 = smul.addr %s802, 4
        %s804 = scalar_lea.vmem %s12, %s803
        %p805 = scmp.lt.s32.totalorder %s35, 1
        %s806 = scalar_select %p805, %s35, 1
        %s807 = scalar_lea.vmem %s13, %s806
        %p808 = scmp.lt.s32.totalorder %s35, 1
        %s809 = scalar_select %p808, %s35, 1
        %s810 = scalar_lea.vmem %s14, %s809
        %p811 = scmp.lt.s32.totalorder %s35, 1
        %s812 = scalar_select %p811, %s35, 1
        %s813 = scalar_lea.vmem %s15, %s812
        %p815 = scmp.eq.s32.totalorder %s35, 0
        // Predicated region
        $region101: #{bert_sst2_forward.1} parent=99 // pred_check
          %p816 = pneg %p815
        $region102: #{bert_sst2_forward.1} parent=99 // pred_check_branch
          %818 = sbr.rel (%p816) target = $region104
        $region103: #{bert_sst2_forward.1} parent=99 // pred_region
          %v819 = vld [vmem:[%s0] sm:$0xff]
          %v820 = vld [vmem:[%s0 + $0x8] sm:$0xff]
          %v821 = vld [vmem:[%s2] sm:$0x1]
          %v822 = vld [vmem:[%s3] sm:$0x1]
          %vm823 = vcmask 261120
          %v824 = vsel %vm823, %v819, 0.0
          %825 = vadd.xlane.f32.xlu0 %v824
          %v826 = vpop.xlane.xlu0 %825
          %v827 = vsel %vm823, %v820, 0.0
          %828 = vadd.xlane.f32.xlu0 %v827
          %v829 = vpop.xlane.xlu0 %828
          %v830 = vrcp.pop 32.0
          %v831 = vmul.f32 32.0, %v830
          %v832 = vsub.f32 1.0, %v831
          %v833 = vmul.f32 %v830, %v832
          %v834 = vadd.f32 %v830, %v833
          %vm835 = vweird.f32 %v830
          %v836 = vsel %vm835, %v830, %v834
          %v837 = vmul.f32 %v826, %v836
          %v838 = vmul.f32 %v829, %v836
          %v839 = vsub.f32 %v819, %v837
          %v840 = vsub.f32 %v820, %v838
          %v841 = vmul.f32 %v839, %v839
          %v842 = vmul.f32 %v840, %v840
          %v843 = vsel %vm823, %v841, 0.0
          %844 = vadd.xlane.f32.xlu0 %v843
          %v845 = vpop.xlane.xlu0 %844
          %v846 = vsel %vm823, %v842, 0.0
          %847 = vadd.xlane.f32.xlu0 %v846
          %v848 = vpop.xlane.xlu0 %847
          %v849 = vmul.f32 %v845, %v836
          %v850 = vmul.f32 %v848, %v836
          %v851 = vadd.f32 %v849, 1e-12
          %v852 = vadd.f32 %v850, 1e-12
          %v853 = vrsqrt.pop %v851
          %v854 = vmul.f32 %v853, %v851
          %v855 = vmul.f32 %v854, %v853
          %v856 = vmul.f32 0.5, %v855
          %v857 = vsub.f32 1.5, %v856
          %v858 = vmul.f32 %v853, %v857
          %vm859 = vweird.f32 %v851
          %vm860 = vweird.f32 %v853
          %vm861 = vmor %vm859, %vm860
          %v862 = vsel %vm861, %v853, %v858
          %v863 = vrsqrt.pop %v852
          %v864 = vmul.f32 %v863, %v852
          %v865 = vmul.f32 %v864, %v863
          %v866 = vmul.f32 0.5, %v865
          %v867 = vsub.f32 1.5, %v866
          %v868 = vmul.f32 %v863, %v867
          %vm869 = vweird.f32 %v852
          %vm870 = vweird.f32 %v863
          %vm871 = vmor %vm869, %vm870
          %v872 = vsel %vm871, %v863, %v868
          %v873 = vmul.f32 %v839, %v862
          %v874 = vmul.f32 %v840, %v872
          %v876 = vperm.slane %v821, 0
          %v878 = vmul.f32 %v873, %v876
          %v879 = vmul.f32 %v874, %v876
          %v881 = vperm.slane %v822, 0
          %v883 = vadd.f32 %v878, %v881
          %v884 = vadd.f32 %v879, %v881
          %885 = vst.msk [vmem:[#allocation2] sm:$0xff] %vm823, %v883
          %886 = vst.msk [vmem:[#allocation2 + $0x8] sm:$0xff] %vm823, %v884
          %887 = vst [vmem:[#allocation4] sm:$0x3] 0.0
        $region104: #{bert_sst2_forward.1} parent=99 // pred_fallthru
          _
        %v888 = vld [vmem:[#allocation2] sm:$0xff]
        %v889 = vld [vmem:[#allocation2 + $0x8] sm:$0xff]
        %v890 = vpack.c.bf16 %v889, %v888
        %v891 = vld [vmem:[%s774] sm:$0xf]
        %v892 = vld [vmem:[%s774 + $0x4] sm:$0xf]
        %v893 = vld [vmem:[%s774 + $0x8] sm:$0xf]
        %v894 = vld [vmem:[%s774 + $0xc] sm:$0xf]
        %v895 = vld [vmem:[%s777] sm:$0x1]
        %v897 = vperm.slane %v895, 0
        %v903 = vunpack.c.l.b16 %v891
        %v904 = vunpack.c.l.b16 %v892
        %v905 = vunpack.c.l.b16 %v893
        %v906 = vunpack.c.l.b16 %v894
        %v907 = vpack.c.b16 %v904, %v903
        %v908 = vpack.c.b16 %v906, %v905
        %vm911 = vcmask 261120
        %v913 = vsel %vm911, %v890, 0
        %915 = vmatpush.bf16.msra.mxu0 0
        %916 = vmatpush.bf16.msra.mxu0 0
        %917 = vmatpush.bf16.msra.mxu0 0
        %918 = vmatpush.bf16.msra.mxu0 0
        %919 = vmatpush.bf16.msra.mxu0 0
        %920 = vmatpush.bf16.msra.mxu0 0
        %921 = vmatpush.bf16.msra.mxu0 %v908
        %922 = vmatpush.bf16.msra.mxu0 %v907
        %923 = vmatmul.bf16.gmra.mxu0 %v913
        %v924 = vpop.f32.mrf.mxu0
        %v925 = vadd.f32 %v897, %v924
        %v926 = vpop.f32.mrf.mxu0
        %v927 = vadd.f32 %v897, %v926
        %928 = vdwg.mxu0
        %v929 = vld [vmem:[%s1] sm:$0x1]
        %v930 = vld [vmem:[%s1 + $0x1] sm:$0x1]
        %932 = vrot.lane.b32.xlu0 %v925, 120
        %v933 = vpop.permute.xlu0 %932
        %935 = vrot.lane.b32.xlu0 %v925, 112
        %v936 = vpop.permute.xlu0 %935
        %938 = vrot.lane.b32.xlu0 %v925, 104
        %v939 = vpop.permute.xlu0 %938
        %v941 = vpack.c.bf16 %v925, %v925
        %v942 = vpack.c.bf16 %v933, %v933
        %v943 = vpack.c.bf16 %v936, %v936
        %v944 = vpack.c.bf16 %v939, %v939
        %v946 = vperm.slane %v929, 0
        %v949 = vunpack.c.l.b16 %v941
        %v950 = vpack.c.b16 %v949, %v949
        %951 = vrot.lane.b32.xlu0 %v950, 96
        %v952 = vpop.permute.xlu0 %951
        %vm953 = vcmask 64512
        %v955 = vsel %vm953, %v941, 0
        %v958 = vsel %vm953, %v952, 0
        %960 = vmatpush.bf16.xpose.msra.mxu0 0
        %961 = vmatpush.bf16.xpose.msra.mxu0 0
        %962 = vmatpush.bf16.xpose.msra.mxu0 0
        %963 = vmatpush.bf16.xpose.msra.mxu0 0
        %964 = vmatpush.bf16.xpose.msra.mxu0 0
        %965 = vmatpush.bf16.xpose.msra.mxu0 0
        %966 = vmatpush.bf16.xpose.msra.mxu0 0
        %967 = vmatpush.bf16.xpose.msra.mxu0 %v958
        %968 = vmatmul.bf16.gmra.mxu0 %v955
        %v969 = vpop.f32.mrf.mxu0
        %v970 = vadd.f32 %v946, %v969
        %v971 = vpop.f32.mrf.mxu0
        %972 = vdwg.mxu0
        %v974 = vunpack.c.l.b16 %v942
        %v975 = vpack.c.b16 %v974, %v974
        %976 = vrot.lane.b32.xlu0 %v975, 96
        %v977 = vpop.permute.xlu0 %976
        %v979 = vsel %vm953, %v942, 0
        %v982 = vsel %vm953, %v977, 0
        %984 = vmatpush.bf16.xpose.msra.mxu0 0
        %985 = vmatpush.bf16.xpose.msra.mxu0 0
        %986 = vmatpush.bf16.xpose.msra.mxu0 0
        %987 = vmatpush.bf16.xpose.msra.mxu0 0
        %988 = vmatpush.bf16.xpose.msra.mxu0 0
        %989 = vmatpush.bf16.xpose.msra.mxu0 0
        %990 = vmatpush.bf16.xpose.msra.mxu0 0
        %991 = vmatpush.bf16.xpose.msra.mxu0 %v982
        %992 = vmatmul.bf16.gmra.mxu0 %v979
        %v993 = vpop.f32.mrf.mxu0
        %v994 = vadd.f32 %v946, %v993
        %v995 = vpop.f32.mrf.mxu0
        %996 = vdwg.mxu0
        %v998 = vunpack.c.l.b16 %v943
        %v999 = vpack.c.b16 %v998, %v998
        %1000 = vrot.lane.b32.xlu0 %v999, 96
        %v1001 = vpop.permute.xlu0 %1000
        %v1003 = vsel %vm953, %v943, 0
        %v1006 = vsel %vm953, %v1001, 0
        %1008 = vmatpush.bf16.xpose.msra.mxu0 0
        %1009 = vmatpush.bf16.xpose.msra.mxu0 0
        %1010 = vmatpush.bf16.xpose.msra.mxu0 0
        %1011 = vmatpush.bf16.xpose.msra.mxu0 0
        %1012 = vmatpush.bf16.xpose.msra.mxu0 0
        %1013 = vmatpush.bf16.xpose.msra.mxu0 0
        %1014 = vmatpush.bf16.xpose.msra.mxu0 0
        %1015 = vmatpush.bf16.xpose.msra.mxu0 %v1006
        %1016 = vmatmul.bf16.gmra.mxu0 %v1003
        %v1017 = vpop.f32.mrf.mxu0
        %v1018 = vadd.f32 %v946, %v1017
        %v1019 = vpop.f32.mrf.mxu0
        %1020 = vdwg.mxu0
        %v1022 = vunpack.c.l.b16 %v944
        %v1023 = vpack.c.b16 %v1022, %v1022
        %1024 = vrot.lane.b32.xlu0 %v1023, 96
        %v1025 = vpop.permute.xlu0 %1024
        %v1027 = vsel %vm953, %v944, 0
        %v1030 = vsel %vm953, %v1025, 0
        %1032 = vmatpush.bf16.xpose.msra.mxu0 0
        %1033 = vmatpush.bf16.xpose.msra.mxu0 0
        %1034 = vmatpush.bf16.xpose.msra.mxu0 0
        %1035 = vmatpush.bf16.xpose.msra.mxu0 0
        %1036 = vmatpush.bf16.xpose.msra.mxu0 0
        %1037 = vmatpush.bf16.xpose.msra.mxu0 0
        %1038 = vmatpush.bf16.xpose.msra.mxu0 0
        %1039 = vmatpush.bf16.xpose.msra.mxu0 %v1030
        %1040 = vmatmul.bf16.gmra.mxu0 %v1027
        %v1041 = vpop.f32.mrf.mxu0
        %v1042 = vadd.f32 %v946, %v1041
        %v1043 = vpop.f32.mrf.mxu0
        %1044 = vdwg.mxu0
        %v1045 = vsel %vm953, %v970, -inf
        %1046 = vmax.xlane.f32.xlu0 %v1045
        %v1047 = vpop.xlane.xlu0 %1046
        %v1048 = vsel %vm953, %v994, -inf
        %1049 = vmax.xlane.f32.xlu0 %v1048
        %v1050 = vpop.xlane.xlu0 %1049
        %v1051 = vsel %vm953, %v1018, -inf
        %1052 = vmax.xlane.f32.xlu0 %v1051
        %v1053 = vpop.xlane.xlu0 %1052
        %v1054 = vsel %vm953, %v1042, -inf
        %1055 = vmax.xlane.f32.xlu0 %v1054
        %v1056 = vpop.xlane.xlu0 %1055
        %v1057 = vsub.f32 %v970, %v1047
        %v1058 = vsub.f32 %v994, %v1050
        %v1059 = vsub.f32 %v1018, %v1053
        %v1060 = vsub.f32 %v1042, %v1056
        %v1061 = vmul.f32 %v1057, 1.442695
        %v1062 = vpow.pop %v1061
        %v1063 = vmul.f32 %v1058, 1.442695
        %v1064 = vpow.pop %v1063
        %v1065 = vmul.f32 %v1059, 1.442695
        %v1066 = vpow.pop %v1065
        %v1067 = vmul.f32 %v1060, 1.442695
        %v1068 = vpow.pop %v1067
        %v1069 = vsel %vm953, %v1062, 0.0
        %1070 = vadd.xlane.f32.xlu0 %v1069
        %v1071 = vpop.xlane.xlu0 %1070
        %v1072 = vsel %vm953, %v1064, 0.0
        %1073 = vadd.xlane.f32.xlu0 %v1072
        %v1074 = vpop.xlane.xlu0 %1073
        %v1075 = vsel %vm953, %v1066, 0.0
        %1076 = vadd.xlane.f32.xlu0 %v1075
        %v1077 = vpop.xlane.xlu0 %1076
        %v1078 = vsel %vm953, %v1068, 0.0
        %1079 = vadd.xlane.f32.xlu0 %v1078
        %v1080 = vpop.xlane.xlu0 %1079
        %v1081 = vrcp.pop %v1071
        %v1082 = vrcp.pop %v1074
        %v1083 = vrcp.pop %v1077
        %v1084 = vrcp.pop %v1080
        %v1085 = vmul.f32 %v1062, %v1081
        %v1086 = vmul.f32 %v1064, %v1082
        %v1087 = vmul.f32 %v1066, %v1083
        %v1088 = vmul.f32 %v1068, %v1084
        %v1089 = vpack.c.bf16 %v1085, %v1085
        %v1090 = vpack.c.bf16 %v1086, %v1086
        %v1091 = vpack.c.bf16 %v1087, %v1087
        %v1092 = vpack.c.bf16 %v1088, %v1088
        %1093 = vrot.lane.b32.xlu0 %v950, 64
        %v1094 = vpop.permute.xlu0 %1093
        %v1096 = vsel %vm953, %v1089, 0
        %vm1098 = vcmask 1043456
        %v1100 = vsel %vm1098, %v1094, 0
        %1102 = vmatpush.bf16.msra.mxu0 0
        %1103 = vmatpush.bf16.msra.mxu0 0
        %1104 = vmatpush.bf16.msra.mxu0 0
        %1105 = vmatpush.bf16.msra.mxu0 0
        %1106 = vmatpush.bf16.msra.mxu0 0
        %1107 = vmatpush.bf16.msra.mxu0 0
        %1108 = vmatpush.bf16.msra.mxu0 0
        %1109 = vmatpush.bf16.msra.mxu0 %v1100
        %1110 = vmatmul.bf16.gmra.mxu0 %v1096
        %v1111 = vpop.f32.mrf.mxu0
        %v1112 = vadd.f32 0.0, %v1111
        %v1113 = vpop.f32.mrf.mxu0
        %1114 = vdwg.mxu0
        %1115 = vrot.lane.b32.xlu0 %v975, 64
        %v1116 = vpop.permute.xlu0 %1115
        %v1118 = vsel %vm953, %v1090, 0
        %v1121 = vsel %vm1098, %v1116, 0
        %1123 = vmatpush.bf16.msra.mxu0 0
        %1124 = vmatpush.bf16.msra.mxu0 0
        %1125 = vmatpush.bf16.msra.mxu0 0
        %1126 = vmatpush.bf16.msra.mxu0 0
        %1127 = vmatpush.bf16.msra.mxu0 0
        %1128 = vmatpush.bf16.msra.mxu0 0
        %1129 = vmatpush.bf16.msra.mxu0 0
        %1130 = vmatpush.bf16.msra.mxu0 %v1121
        %1131 = vmatmul.bf16.gmra.mxu0 %v1118
        %v1132 = vpop.f32.mrf.mxu0
        %v1133 = vadd.f32 0.0, %v1132
        %v1134 = vpop.f32.mrf.mxu0
        %1135 = vdwg.mxu0
        %1136 = vrot.lane.b32.xlu0 %v999, 64
        %v1137 = vpop.permute.xlu0 %1136
        %v1139 = vsel %vm953, %v1091, 0
        %v1142 = vsel %vm1098, %v1137, 0
        %1144 = vmatpush.bf16.msra.mxu0 0
        %1145 = vmatpush.bf16.msra.mxu0 0
        %1146 = vmatpush.bf16.msra.mxu0 0
        %1147 = vmatpush.bf16.msra.mxu0 0
        %1148 = vmatpush.bf16.msra.mxu0 0
        %1149 = vmatpush.bf16.msra.mxu0 0
        %1150 = vmatpush.bf16.msra.mxu0 0
        %1151 = vmatpush.bf16.msra.mxu0 %v1142
        %1152 = vmatmul.bf16.gmra.mxu0 %v1139
        %v1153 = vpop.f32.mrf.mxu0
        %v1154 = vadd.f32 0.0, %v1153
        %v1155 = vpop.f32.mrf.mxu0
        %1156 = vdwg.mxu0
        %1157 = vrot.lane.b32.xlu0 %v1023, 64
        %v1158 = vpop.permute.xlu0 %1157
        %v1160 = vsel %vm953, %v1092, 0
        %v1163 = vsel %vm1098, %v1158, 0
        %1165 = vmatpush.bf16.msra.mxu0 0
        %1166 = vmatpush.bf16.msra.mxu0 0
        %1167 = vmatpush.bf16.msra.mxu0 0
        %1168 = vmatpush.bf16.msra.mxu0 0
        %1169 = vmatpush.bf16.msra.mxu0 0
        %1170 = vmatpush.bf16.msra.mxu0 0
        %1171 = vmatpush.bf16.msra.mxu0 0
        %1172 = vmatpush.bf16.msra.mxu0 %v1163
        %1173 = vmatmul.bf16.gmra.mxu0 %v1160
        %v1174 = vpop.f32.mrf.mxu0
        %v1175 = vadd.f32 0.0, %v1174
        %v1176 = vpop.f32.mrf.mxu0
        %1177 = vdwg.mxu0
        %1179 = vrot.lane.b32.xlu0 %v1133, 8
        %v1180 = vpop.permute.xlu0 %1179
        %1183 = vrot.lane.b32.xlu0 %v1154, 16
        %v1184 = vpop.permute.xlu0 %1183
        %1187 = vrot.lane.b32.xlu0 %v1175, 24
        %v1188 = vpop.permute.xlu0 %1187
        %v1190 = vsel %vm953, %v1112, %v1180
        %vm1191 = vcmask 130048
        %v1192 = vsel %vm1191, %v1190, %v1184
        %vm1193 = vcmask 195584
        %v1194 = vsel %vm1193, %v1192, %v1188
        %1196 = vrot.lane.b32.xlu0 %v927, 120
        %v1197 = vpop.permute.xlu0 %1196
        %1199 = vrot.lane.b32.xlu0 %v927, 112
        %v1200 = vpop.permute.xlu0 %1199
        %1202 = vrot.lane.b32.xlu0 %v927, 104
        %v1203 = vpop.permute.xlu0 %1202
        %v1205 = vpack.c.bf16 %v927, %v927
        %v1206 = vpack.c.bf16 %v1197, %v1197
        %v1207 = vpack.c.bf16 %v1200, %v1200
        %v1208 = vpack.c.bf16 %v1203, %v1203
        %v1210 = vperm.slane %v930, 0
        %v1213 = vunpack.c.l.b16 %v1205
        %v1214 = vpack.c.b16 %v1213, %v1213
        %1215 = vrot.lane.b32.xlu0 %v1214, 96
        %v1216 = vpop.permute.xlu0 %1215
        %v1218 = vsel %vm953, %v1205, 0
        %v1221 = vsel %vm953, %v1216, 0
        %1223 = vmatpush.bf16.xpose.msra.mxu0 0
        %1224 = vmatpush.bf16.xpose.msra.mxu0 0
        %1225 = vmatpush.bf16.xpose.msra.mxu0 0
        %1226 = vmatpush.bf16.xpose.msra.mxu0 0
        %1227 = vmatpush.bf16.xpose.msra.mxu0 0
        %1228 = vmatpush.bf16.xpose.msra.mxu0 0
        %1229 = vmatpush.bf16.xpose.msra.mxu0 0
        %1230 = vmatpush.bf16.xpose.msra.mxu0 %v1221
        %1231 = vmatmul.bf16.gmra.mxu0 %v1218
        %v1232 = vpop.f32.mrf.mxu0
        %v1233 = vadd.f32 %v1210, %v1232
        %v1234 = vpop.f32.mrf.mxu0
        %1235 = vdwg.mxu0
        %v1237 = vunpack.c.l.b16 %v1206
        %v1238 = vpack.c.b16 %v1237, %v1237
        %1239 = vrot.lane.b32.xlu0 %v1238, 96
        %v1240 = vpop.permute.xlu0 %1239
        %v1242 = vsel %vm953, %v1206, 0
        %v1245 = vsel %vm953, %v1240, 0
        %1247 = vmatpush.bf16.xpose.msra.mxu0 0
        %1248 = vmatpush.bf16.xpose.msra.mxu0 0
        %1249 = vmatpush.bf16.xpose.msra.mxu0 0
        %1250 = vmatpush.bf16.xpose.msra.mxu0 0
        %1251 = vmatpush.bf16.xpose.msra.mxu0 0
        %1252 = vmatpush.bf16.xpose.msra.mxu0 0
        %1253 = vmatpush.bf16.xpose.msra.mxu0 0
        %1254 = vmatpush.bf16.xpose.msra.mxu0 %v1245
        %1255 = vmatmul.bf16.gmra.mxu0 %v1242
        %v1256 = vpop.f32.mrf.mxu0
        %v1257 = vadd.f32 %v1210, %v1256
        %v1258 = vpop.f32.mrf.mxu0
        %1259 = vdwg.mxu0
        %v1261 = vunpack.c.l.b16 %v1207
        %v1262 = vpack.c.b16 %v1261, %v1261
        %1263 = vrot.lane.b32.xlu0 %v1262, 96
        %v1264 = vpop.permute.xlu0 %1263
        %v1266 = vsel %vm953, %v1207, 0
        %v1269 = vsel %vm953, %v1264, 0
        %1271 = vmatpush.bf16.xpose.msra.mxu0 0
        %1272 = vmatpush.bf16.xpose.msra.mxu0 0
        %1273 = vmatpush.bf16.xpose.msra.mxu0 0
        %1274 = vmatpush.bf16.xpose.msra.mxu0 0
        %1275 = vmatpush.bf16.xpose.msra.mxu0 0
        %1276 = vmatpush.bf16.xpose.msra.mxu0 0
        %1277 = vmatpush.bf16.xpose.msra.mxu0 0
        %1278 = vmatpush.bf16.xpose.msra.mxu0 %v1269
        %1279 = vmatmul.bf16.gmra.mxu0 %v1266
        %v1280 = vpop.f32.mrf.mxu0
        %v1281 = vadd.f32 %v1210, %v1280
        %v1282 = vpop.f32.mrf.mxu0
        %1283 = vdwg.mxu0
        %v1285 = vunpack.c.l.b16 %v1208
        %v1286 = vpack.c.b16 %v1285, %v1285
        %1287 = vrot.lane.b32.xlu0 %v1286, 96
        %v1288 = vpop.permute.xlu0 %1287
        %v1290 = vsel %vm953, %v1208, 0
        %v1293 = vsel %vm953, %v1288, 0
        %1295 = vmatpush.bf16.xpose.msra.mxu0 0
        %1296 = vmatpush.bf16.xpose.msra.mxu0 0
        %1297 = vmatpush.bf16.xpose.msra.mxu0 0
        %1298 = vmatpush.bf16.xpose.msra.mxu0 0
        %1299 = vmatpush.bf16.xpose.msra.mxu0 0
        %1300 = vmatpush.bf16.xpose.msra.mxu0 0
        %1301 = vmatpush.bf16.xpose.msra.mxu0 0
        %1302 = vmatpush.bf16.xpose.msra.mxu0 %v1293
        %1303 = vmatmul.bf16.gmra.mxu0 %v1290
        %v1304 = vpop.f32.mrf.mxu0
        %v1305 = vadd.f32 %v1210, %v1304
        %v1306 = vpop.f32.mrf.mxu0
        %1307 = vdwg.mxu0
        %v1308 = vsel %vm953, %v1233, -inf
        %1309 = vmax.xlane.f32.xlu0 %v1308
        %v1310 = vpop.xlane.xlu0 %1309
        %v1311 = vsel %vm953, %v1257, -inf
        %1312 = vmax.xlane.f32.xlu0 %v1311
        %v1313 = vpop.xlane.xlu0 %1312
        %v1314 = vsel %vm953, %v1281, -inf
        %1315 = vmax.xlane.f32.xlu0 %v1314
        %v1316 = vpop.xlane.xlu0 %1315
        %v1317 = vsel %vm953, %v1305, -inf
        %1318 = vmax.xlane.f32.xlu0 %v1317
        %v1319 = vpop.xlane.xlu0 %1318
        %v1320 = vsub.f32 %v1233, %v1310
        %v1321 = vsub.f32 %v1257, %v1313
        %v1322 = vsub.f32 %v1281, %v1316
        %v1323 = vsub.f32 %v1305, %v1319
        %v1324 = vmul.f32 %v1320, 1.442695
        %v1325 = vpow.pop %v1324
        %v1326 = vmul.f32 %v1321, 1.442695
        %v1327 = vpow.pop %v1326
        %v1328 = vmul.f32 %v1322, 1.442695
        %v1329 = vpow.pop %v1328
        %v1330 = vmul.f32 %v1323, 1.442695
        %v1331 = vpow.pop %v1330
        %v1332 = vsel %vm953, %v1325, 0.0
        %1333 = vadd.xlane.f32.xlu0 %v1332
        %v1334 = vpop.xlane.xlu0 %1333
        %v1335 = vsel %vm953, %v1327, 0.0
        %1336 = vadd.xlane.f32.xlu0 %v1335
        %v1337 = vpop.xlane.xlu0 %1336
        %v1338 = vsel %vm953, %v1329, 0.0
        %1339 = vadd.xlane.f32.xlu0 %v1338
        %v1340 = vpop.xlane.xlu0 %1339
        %v1341 = vsel %vm953, %v1331, 0.0
        %1342 = vadd.xlane.f32.xlu0 %v1341
        %v1343 = vpop.xlane.xlu0 %1342
        %v1344 = vrcp.pop %v1334
        %v1345 = vrcp.pop %v1337
        %v1346 = vrcp.pop %v1340
        %v1347 = vrcp.pop %v1343
        %v1348 = vmul.f32 %v1325, %v1344
        %v1349 = vmul.f32 %v1327, %v1345
        %v1350 = vmul.f32 %v1329, %v1346
        %v1351 = vmul.f32 %v1331, %v1347
        %v1352 = vpack.c.bf16 %v1348, %v1348
        %v1353 = vpack.c.bf16 %v1349, %v1349
        %v1354 = vpack.c.bf16 %v1350, %v1350
        %v1355 = vpack.c.bf16 %v1351, %v1351
        %1356 = vrot.lane.b32.xlu0 %v1214, 64
        %v1357 = vpop.permute.xlu0 %1356
        %v1359 = vsel %vm953, %v1352, 0
        %v1362 = vsel %vm1098, %v1357, 0
        %1364 = vmatpush.bf16.msra.mxu0 0
        %1365 = vmatpush.bf16.msra.mxu0 0
        %1366 = vmatpush.bf16.msra.mxu0 0
        %1367 = vmatpush.bf16.msra.mxu0 0
        %1368 = vmatpush.bf16.msra.mxu0 0
        %1369 = vmatpush.bf16.msra.mxu0 0
        %1370 = vmatpush.bf16.msra.mxu0 0
        %1371 = vmatpush.bf16.msra.mxu0 %v1362
        %1372 = vmatmul.bf16.gmra.mxu0 %v1359
        %v1373 = vpop.f32.mrf.mxu0
        %v1374 = vadd.f32 0.0, %v1373
        %v1375 = vpop.f32.mrf.mxu0
        %1376 = vdwg.mxu0
        %1377 = vrot.lane.b32.xlu0 %v1238, 64
        %v1378 = vpop.permute.xlu0 %1377
        %v1380 = vsel %vm953, %v1353, 0
        %v1383 = vsel %vm1098, %v1378, 0
        %1385 = vmatpush.bf16.msra.mxu0 0
        %1386 = vmatpush.bf16.msra.mxu0 0
        %1387 = vmatpush.bf16.msra.mxu0 0
        %1388 = vmatpush.bf16.msra.mxu0 0
        %1389 = vmatpush.bf16.msra.mxu0 0
        %1390 = vmatpush.bf16.msra.mxu0 0
        %1391 = vmatpush.bf16.msra.mxu0 0
        %1392 = vmatpush.bf16.msra.mxu0 %v1383
        %1393 = vmatmul.bf16.gmra.mxu0 %v1380
        %v1394 = vpop.f32.mrf.mxu0
        %v1395 = vadd.f32 0.0, %v1394
        %v1396 = vpop.f32.mrf.mxu0
        %1397 = vdwg.mxu0
        %1398 = vrot.lane.b32.xlu0 %v1262, 64
        %v1399 = vpop.permute.xlu0 %1398
        %v1401 = vsel %vm953, %v1354, 0
        %v1404 = vsel %vm1098, %v1399, 0
        %1406 = vmatpush.bf16.msra.mxu0 0
        %1407 = vmatpush.bf16.msra.mxu0 0
        %1408 = vmatpush.bf16.msra.mxu0 0
        %1409 = vmatpush.bf16.msra.mxu0 0
        %1410 = vmatpush.bf16.msra.mxu0 0
        %1411 = vmatpush.bf16.msra.mxu0 0
        %1412 = vmatpush.bf16.msra.mxu0 0
        %1413 = vmatpush.bf16.msra.mxu0 %v1404
        %1414 = vmatmul.bf16.gmra.mxu0 %v1401
        %v1415 = vpop.f32.mrf.mxu0
        %v1416 = vadd.f32 0.0, %v1415
        %v1417 = vpop.f32.mrf.mxu0
        %1418 = vdwg.mxu0
        %1419 = vrot.lane.b32.xlu0 %v1286, 64
        %v1420 = vpop.permute.xlu0 %1419
        %v1422 = vsel %vm953, %v1355, 0
        %v1425 = vsel %vm1098, %v1420, 0
        %1427 = vmatpush.bf16.msra.mxu0 0
        %1428 = vmatpush.bf16.msra.mxu0 0
        %1429 = vmatpush.bf16.msra.mxu0 0
        %1430 = vmatpush.bf16.msra.mxu0 0
        %1431 = vmatpush.bf16.msra.mxu0 0
        %1432 = vmatpush.bf16.msra.mxu0 0
        %1433 = vmatpush.bf16.msra.mxu0 0
        %1434 = vmatpush.bf16.msra.mxu0 %v1425
        %1435 = vmatmul.bf16.gmra.mxu0 %v1422
        %v1436 = vpop.f32.mrf.mxu0
        %v1437 = vadd.f32 0.0, %v1436
        %v1438 = vpop.f32.mrf.mxu0
        %1439 = vdwg.mxu0
        %1441 = vrot.lane.b32.xlu0 %v1395, 8
        %v1442 = vpop.permute.xlu0 %1441
        %1445 = vrot.lane.b32.xlu0 %v1416, 16
        %v1446 = vpop.permute.xlu0 %1445
        %1449 = vrot.lane.b32.xlu0 %v1437, 24
        %v1450 = vpop.permute.xlu0 %1449
        %v1452 = vsel %vm953, %v1374, %v1442
        %v1453 = vsel %vm1191, %v1452, %v1446
        %v1454 = vsel %vm1193, %v1453, %v1450
        %v1455 = vpack.c.bf16 %v1454, %v1194
        %v1456 = vld [vmem:[%s782] sm:$0xf]
        %v1457 = vld [vmem:[%s782 + $0x4] sm:$0xf]
        %v1458 = vld [vmem:[%s782 + $0x8] sm:$0xf]
        %v1459 = vld [vmem:[%s782 + $0xc] sm:$0xf]
        %v1460 = vld [vmem:[%s785] sm:$0x1]
        %v1462 = vperm.slane %v1460, 0
        %v1468 = vunpack.c.l.b16 %v1456
        %v1469 = vunpack.c.l.b16 %v1457
        %v1470 = vunpack.c.l.b16 %v1458
        %v1471 = vunpack.c.l.b16 %v1459
        %v1472 = vpack.c.b16 %v1469, %v1468
        %v1473 = vpack.c.b16 %v1471, %v1470
        %v1477 = vsel %vm911, %v1455, 0
        %1479 = vmatpush.bf16.msra.mxu0 0
        %1480 = vmatpush.bf16.msra.mxu0 0
        %1481 = vmatpush.bf16.msra.mxu0 0
        %1482 = vmatpush.bf16.msra.mxu0 0
        %1483 = vmatpush.bf16.msra.mxu0 0
        %1484 = vmatpush.bf16.msra.mxu0 0
        %1485 = vmatpush.bf16.msra.mxu0 %v1473
        %1486 = vmatpush.bf16.msra.mxu0 %v1472
        %1487 = vmatmul.bf16.gmra.mxu0 %v1477
        %v1488 = vpop.f32.mrf.mxu0
        %v1489 = vadd.f32 %v1462, %v1488
        %v1490 = vpop.f32.mrf.mxu0
        %v1491 = vadd.f32 %v1462, %v1490
        %1492 = vdwg.mxu0
        %v1493 = vadd.f32 %v1489, %v888
        %v1494 = vadd.f32 %v1491, %v889
        %v1495 = vld [vmem:[%s788] sm:$0x1]
        %v1496 = vld [vmem:[%s791] sm:$0x1]
        %v1497 = vsel %vm911, %v1493, 0.0
        %1498 = vadd.xlane.f32.xlu0 %v1497
        %v1499 = vpop.xlane.xlu0 %1498
        %v1500 = vsel %vm911, %v1494, 0.0
        %1501 = vadd.xlane.f32.xlu0 %v1500
        %v1502 = vpop.xlane.xlu0 %1501
        %v1503 = vrcp.pop 32.0
        %v1504 = vmul.f32 32.0, %v1503
        %v1505 = vsub.f32 1.0, %v1504
        %v1506 = vmul.f32 %v1503, %v1505
        %v1507 = vadd.f32 %v1503, %v1506
        %vm1508 = vweird.f32 %v1503
        %v1509 = vsel %vm1508, %v1503, %v1507
        %v1510 = vmul.f32 %v1499, %v1509
        %v1511 = vmul.f32 %v1502, %v1509
        %v1512 = vsub.f32 %v1493, %v1510
        %v1513 = vsub.f32 %v1494, %v1511
        %v1514 = vmul.f32 %v1512, %v1512
        %v1515 = vmul.f32 %v1513, %v1513
        %v1516 = vsel %vm911, %v1514, 0.0
        %1517 = vadd.xlane.f32.xlu0 %v1516
        %v1518 = vpop.xlane.xlu0 %1517
        %v1519 = vsel %vm911, %v1515, 0.0
        %1520 = vadd.xlane.f32.xlu0 %v1519
        %v1521 = vpop.xlane.xlu0 %1520
        %v1522 = vmul.f32 %v1518, %v1509
        %v1523 = vmul.f32 %v1521, %v1509
        %v1524 = vadd.f32 %v1522, 1e-12
        %v1525 = vadd.f32 %v1523, 1e-12
        %v1526 = vrsqrt.pop %v1524
        %v1527 = vmul.f32 %v1526, %v1524
        %v1528 = vmul.f32 %v1527, %v1526
        %v1529 = vmul.f32 0.5, %v1528
        %v1530 = vsub.f32 1.5, %v1529
        %v1531 = vmul.f32 %v1526, %v1530
        %vm1532 = vweird.f32 %v1524
        %vm1533 = vweird.f32 %v1526
        %vm1534 = vmor %vm1532, %vm1533
        %v1535 = vsel %vm1534, %v1526, %v1531
        %v1536 = vrsqrt.pop %v1525
        %v1537 = vmul.f32 %v1536, %v1525
        %v1538 = vmul.f32 %v1537, %v1536
        %v1539 = vmul.f32 0.5, %v1538
        %v1540 = vsub.f32 1.5, %v1539
        %v1541 = vmul.f32 %v1536, %v1540
        %vm1542 = vweird.f32 %v1525
        %vm1543 = vweird.f32 %v1536
        %vm1544 = vmor %vm1542, %vm1543
        %v1545 = vsel %vm1544, %v1536, %v1541
        %v1546 = vmul.f32 %v1512, %v1535
        %v1547 = vmul.f32 %v1513, %v1545
        %v1549 = vperm.slane %v1495, 0
        %v1551 = vmul.f32 %v1546, %v1549
        %v1552 = vmul.f32 %v1547, %v1549
        %v1554 = vperm.slane %v1496, 0
        %v1556 = vadd.f32 %v1551, %v1554
        %v1557 = vadd.f32 %v1552, %v1554
        %v1558 = vpack.c.bf16 %v1557, %v1556
        %v1559 = vld [vmem:[%s796] sm:$0xf]
        %v1560 = vld [vmem:[%s796 + $0x4] sm:$0xf]
        %v1561 = vld [vmem:[%s796 + $0x8] sm:$0xf]
        %v1562 = vld [vmem:[%s796 + $0xc] sm:$0xf]
        %v1563 = vld [vmem:[%s799] sm:$0x1]
        %v1565 = vperm.slane %v1563, 0
        %v1571 = vunpack.c.l.b16 %v1559
        %v1572 = vunpack.c.l.b16 %v1560
        %v1573 = vunpack.c.l.b16 %v1561
        %v1574 = vunpack.c.l.b16 %v1562
        %v1575 = vpack.c.b16 %v1572, %v1571
        %v1576 = vpack.c.b16 %v1574, %v1573
        %v1580 = vsel %vm911, %v1558, 0
        %1582 = vmatpush.bf16.msra.mxu0 0
        %1583 = vmatpush.bf16.msra.mxu0 0
        %1584 = vmatpush.bf16.msra.mxu0 0
        %1585 = vmatpush.bf16.msra.mxu0 0
        %1586 = vmatpush.bf16.msra.mxu0 0
        %1587 = vmatpush.bf16.msra.mxu0 0
        %1588 = vmatpush.bf16.msra.mxu0 %v1576
        %1589 = vmatpush.bf16.msra.mxu0 %v1575
        %1590 = vmatmul.bf16.gmra.mxu0 %v1580
        %v1591 = vpop.f32.mrf.mxu0
        %v1592 = vadd.f32 %v1565, %v1591
        %v1593 = vpop.f32.mrf.mxu0
        %v1594 = vadd.f32 %v1565, %v1593
        %1595 = vdwg.mxu0
        %v1596 = vmul.f32 %v1592, 0.5
        %v1597 = vmul.f32 %v1594, 0.5
        %v1598 = vmul.f32 %v1592, 0.044715
        %v1599 = vmul.f32 %v1594, 0.044715
        %v1600 = vmul.f32 %v1598, %v1592
        %v1601 = vmul.f32 %v1599, %v1594
        %v1602 = vmul.f32 %v1600, %v1592
        %v1603 = vmul.f32 %v1601, %v1594
        %v1604 = vadd.f32 %v1592, %v1602
        %v1605 = vadd.f32 %v1594, %v1603
        %v1606 = vmul.f32 %v1604, 0.7978846
        %v1607 = vmul.f32 %v1605, 0.7978846
        %v1608 = vtanh.pop %v1606
        %v1609 = vtanh.pop %v1607
        %v1610 = vadd.f32 %v1608, 1.0
        %v1611 = vadd.f32 %v1609, 1.0
        %v1612 = vmul.f32 %v1596, %v1610
        %v1613 = vmul.f32 %v1597, %v1611
        %v1614 = vpack.c.bf16 %v1613, %v1612
        %v1615 = vld [vmem:[%s804] sm:$0xf]
        %v1616 = vld [vmem:[%s804 + $0x4] sm:$0xf]
        %v1617 = vld [vmem:[%s804 + $0x8] sm:$0xf]
        %v1618 = vld [vmem:[%s804 + $0xc] sm:$0xf]
        %v1619 = vld [vmem:[%s804 + $0x10] sm:$0xf]
        %v1620 = vld [vmem:[%s804 + $0x14] sm:$0xf]
        %v1621 = vld [vmem:[%s804 + $0x18] sm:$0xf]
        %v1622 = vld [vmem:[%s804 + $0x1c] sm:$0xf]
        %v1623 = vld [vmem:[%s807] sm:$0x1]
        %v1625 = vperm.slane %v1623, 0
        %v1635 = vunpack.c.l.b16 %v1615
        %v1636 = vunpack.c.l.b16 %v1616
        %v1637 = vunpack.c.l.b16 %v1617
        %v1638 = vunpack.c.l.b16 %v1618
        %v1639 = vunpack.c.l.b16 %v1619
        %v1640 = vunpack.c.l.b16 %v1620
        %v1641 = vunpack.c.l.b16 %v1621
        %v1642 = vunpack.c.l.b16 %v1622
        %v1643 = vpack.c.b16 %v1636, %v1635
        %v1644 = vpack.c.b16 %v1638, %v1637
        %v1645 = vpack.c.b16 %v1640, %v1639
        %v1646 = vpack.c.b16 %v1642, %v1641
        %vm1651 = vcmask 523264
        %v1653 = vsel %vm1651, %v1614, 0
        %1655 = vmatpush.bf16.msra.mxu0 0
        %1656 = vmatpush.bf16.msra.mxu0 0
        %1657 = vmatpush.bf16.msra.mxu0 0
        %1658 = vmatpush.bf16.msra.mxu0 0
        %1659 = vmatpush.bf16.msra.mxu0 %v1646
        %1660 = vmatpush.bf16.msra.mxu0 %v1645
        %1661 = vmatpush.bf16.msra.mxu0 %v1644
        %1662 = vmatpush.bf16.msra.mxu0 %v1643
        %1663 = vmatmul.bf16.gmra.mxu0 %v1653
        %v1664 = vpop.f32.mrf.mxu0
        %v1665 = vadd.f32 %v1625, %v1664
        %v1666 = vpop.f32.mrf.mxu0
        %v1667 = vadd.f32 %v1625, %v1666
        %1668 = vdwg.mxu0
        %v1669 = vadd.f32 %v1665, %v1556
        %v1670 = vadd.f32 %v1667, %v1557
        %v1671 = vld [vmem:[%s810] sm:$0x1]
        %v1672 = vld [vmem:[%s813] sm:$0x1]
        %v1673 = vsel %vm911, %v1669, 0.0
        %1674 = vadd.xlane.f32.xlu0 %v1673
        %v1675 = vpop.xlane.xlu0 %1674
        %v1676 = vsel %vm911, %v1670, 0.0
        %1677 = vadd.xlane.f32.xlu0 %v1676
        %v1678 = vpop.xlane.xlu0 %1677
        %v1679 = vmul.f32 %v1675, %v1509
        %v1680 = vmul.f32 %v1678, %v1509
        %v1681 = vsub.f32 %v1669, %v1679
        %v1682 = vsub.f32 %v1670, %v1680
        %v1683 = vmul.f32 %v1681, %v1681
        %v1684 = vmul.f32 %v1682, %v1682
        %v1685 = vsel %vm911, %v1683, 0.0
        %1686 = vadd.xlane.f32.xlu0 %v1685
        %v1687 = vpop.xlane.xlu0 %1686
        %v1688 = vsel %vm911, %v1684, 0.0
        %1689 = vadd.xlane.f32.xlu0 %v1688
        %v1690 = vpop.xlane.xlu0 %1689
        %v1691 = vmul.f32 %v1687, %v1509
        %v1692 = vmul.f32 %v1690, %v1509
        %v1693 = vadd.f32 %v1691, 1e-12
        %v1694 = vadd.f32 %v1692, 1e-12
        %v1695 = vrsqrt.pop %v1693
        %v1696 = vmul.f32 %v1695, %v1693
        %v1697 = vmul.f32 %v1696, %v1695
        %v1698 = vmul.f32 0.5, %v1697
        %v1699 = vsub.f32 1.5, %v1698
        %v1700 = vmul.f32 %v1695, %v1699
        %vm1701 = vweird.f32 %v1693
        %vm1702 = vweird.f32 %v1695
        %vm1703 = vmor %vm1701, %vm1702
        %v1704 = vsel %vm1703, %v1695, %v1700
        %v1705 = vrsqrt.pop %v1694
        %v1706 = vmul.f32 %v1705, %v1694
        %v1707 = vmul.f32 %v1706, %v1705
        %v1708 = vmul.f32 0.5, %v1707
        %v1709 = vsub.f32 1.5, %v1708
        %v1710 = vmul.f32 %v1705, %v1709
        %vm1711 = vweird.f32 %v1694
        %vm1712 = vweird.f32 %v1705
        %vm1713 = vmor %vm1711, %vm1712
        %v1714 = vsel %vm1713, %v1705, %v1710
        %v1715 = vmul.f32 %v1681, %v1704
        %v1716 = vmul.f32 %v1682, %v1714
        %v1718 = vperm.slane %v1671, 0
        %v1720 = vmul.f32 %v1715, %v1718
        %v1721 = vmul.f32 %v1716, %v1718
        %v1723 = vperm.slane %v1672, 0
        %v1725 = vadd.f32 %v1720, %v1723
        %v1726 = vadd.f32 %v1721, %v1723
        %1727 = vst.msk [vmem:[#allocation2] sm:$0xff] %vm911, %v1725
        %1728 = vst.msk [vmem:[#allocation2 + $0x8] sm:$0xff] %vm911, %v1726
        %p1729 = scmp.eq.s32.totalorder %s35, 1
        // Predicated region
        $region105: #{bert_sst2_forward.1} parent=99 // pred_check
          %p1730 = pneg %p1729
        $region106: #{bert_sst2_forward.1} parent=99 // pred_check_branch
          %1732 = sbr.rel (%p1730) target = $region108
        $region107: #{bert_sst2_forward.1} parent=99 // pred_region
          %v1734 = vrot.slane %v1726, 7
          %vm1736 = vcmask 1040384
          %v1737 = vsel %vm1736, %v1725, %v1734
          %v1738 = vpack.c.bf16 %v1737, %v1737
          %v1739 = vld [vmem:[%s16] sm:$0xf]
          %v1740 = vld [vmem:[%s16 + $0x4] sm:$0xf]
          %v1741 = vld [vmem:[%s16 + $0x8] sm:$0xf]
          %v1742 = vld [vmem:[%s16 + $0xc] sm:$0xf]
          %v1743 = vld [vmem:[%s17] sm:$0x1]
          %v1745 = vperm.slane %v1743, 0
          %v1751 = vunpack.c.l.b16 %v1739
          %v1752 = vunpack.c.l.b16 %v1740
          %v1753 = vunpack.c.l.b16 %v1741
          %v1754 = vunpack.c.l.b16 %v1742
          %v1755 = vpack.c.b16 %v1752, %v1751
          %v1756 = vpack.c.b16 %v1754, %v1753
          %v1760 = vsel %vm911, %v1738, 0
          %1762 = vmatpush.bf16.msra.mxu0 0
          %1763 = vmatpush.bf16.msra.mxu0 0
          %1764 = vmatpush.bf16.msra.mxu0 0
          %1765 = vmatpush.bf16.msra.mxu0 0
          %1766 = vmatpush.bf16.msra.mxu0 0
          %1767 = vmatpush.bf16.msra.mxu0 0
          %1768 = vmatpush.bf16.msra.mxu0 %v1756
          %1769 = vmatpush.bf16.msra.mxu0 %v1755
          %1770 = vmatmul.bf16.gmra.mxu0 %v1760
          %v1771 = vpop.f32.mrf.mxu0
          %v1772 = vadd.f32 %v1745, %v1771
          %v1773 = vpop.f32.mrf.mxu0
          %1774 = vdwg.mxu0
          %v1775 = vtanh.pop %v1772
          %v1776 = vpack.c.bf16 %v1775, %v1775
          %v1777 = vld [vmem:[%s18] sm:$0xf]
          %v1778 = vld [vmem:[%s18 + $0x4] sm:$0xf]
          %v1779 = vld [vmem:[%s18 + $0x8] sm:$0xf]
          %v1780 = vld [vmem:[%s18 + $0xc] sm:$0xf]
          %v1781 = vld [vmem:[%s19] sm:$0x1]
          %v1783 = vperm.slane %v1781, 0
          %v1789 = vunpack.c.l.b16 %v1777
          %v1790 = vunpack.c.l.b16 %v1778
          %v1791 = vunpack.c.l.b16 %v1779
          %v1792 = vunpack.c.l.b16 %v1780
          %v1793 = vpack.c.b16 %v1790, %v1789
          %v1794 = vpack.c.b16 %v1792, %v1791
          %v1798 = vsel %vm911, %v1776, 0
          %1800 = vmatpush.bf16.msra.mxu0 0
          %1801 = vmatpush.bf16.msra.mxu0 0
          %1802 = vmatpush.bf16.msra.mxu0 0
          %1803 = vmatpush.bf16.msra.mxu0 0
          %1804 = vmatpush.bf16.msra.mxu0 0
          %1805 = vmatpush.bf16.msra.mxu0 0
          %1806 = vmatpush.bf16.msra.mxu0 %v1794
          %1807 = vmatpush.bf16.msra.mxu0 %v1793
          %1808 = vmatmul.bf16.gmra.mxu0 %v1798
          %v1809 = vpop.f32.mrf.mxu0
          %v1810 = vadd.f32 %v1783, %v1809
          %v1811 = vpop.f32.mrf.mxu0
          %1812 = vdwg.mxu0
          %1813 = vst [vmem:[#allocation4] sm:$0x3] %v1810
        $region108: #{bert_sst2_forward.1} parent=99 // pred_fallthru
          _
        // Predicated region
        $region109: #{bert_sst2_forward.1} parent=99 // pred_check
          %p1814 = pneg %p528
        $region110: #{bert_sst2_forward.1} parent=99 // pred_check_branch
          %1816 = sbr.rel (%p1814) target = $region112
        $region111: #{bert_sst2_forward.1} parent=99 // pred_region
          %1818 = vsyncadd [#allocation3], 0
          %s1819 = sshll.u32 [#allocation2], 4
          %s1820 = int_to_ptr.vmem [resolvable:$true] %s1819
          %s1821 = sshll.u32 %s20, 4
          %s1822 = int_to_ptr.hbm [resolvable:$true] %s1821
          %1827 = dma.vmem_to_hbm [thread:$0]  %s1820, 256, %s1822, [#allocation3], 128, 128, 8
        $region112: #{bert_sst2_forward.1} parent=99 // pred_fallthru
          _
        // Predicated region
        $region113: #{bert_sst2_forward.1} parent=99 // pred_check
          %p1828 = pneg %p549
        $region114: #{bert_sst2_forward.1} parent=99 // pred_check_branch
          %1830 = sbr.rel (%p1828) target = $region116
        $region115: #{bert_sst2_forward.1} parent=99 // pred_region
          %1832 = vsyncadd [#allocation5], 0
          %s1834 = sshll.u32 [#allocation4], 4
          %s1835 = int_to_ptr.vmem [resolvable:$true] %s1834
          %s1836 = sshll.u32 %s21, 4
          %s1837 = int_to_ptr.hbm [resolvable:$true] %s1836
          %1839 = dma.vmem_to_hbm [thread:$0]  %s1835, 32, %s1837, [#allocation5]
        $region116: #{bert_sst2_forward.1} parent=99 // pred_fallthru
          _
        // Predicated region
        $region117: #{bert_sst2_forward.1} parent=99 // pred_check
          %p1840 = pneg %p528
        $region118: #{bert_sst2_forward.1} parent=99 // pred_check_branch
          %1842 = sbr.rel (%p1840) target = $region120
        $region119: #{bert_sst2_forward.1} parent=99 // pred_region
          %1844 = dma.done [#allocation3], 256
        $region120: #{bert_sst2_forward.1} parent=99 // pred_fallthru
          _
        // Predicated region
        $region121: #{bert_sst2_forward.1} parent=99 // pred_check
          %p1845 = pneg %p549
        $region122: #{bert_sst2_forward.1} parent=99 // pred_check_branch
          %1847 = sbr.rel (%p1845) target = $region124
        $region123: #{bert_sst2_forward.1} parent=99 // pred_region
          %1849 = dma.done [#allocation5], 32
        $region124: #{bert_sst2_forward.1} parent=99 // pred_fallthru
          _
      $region100: #{bert_sst2_forward.1} parent=5 // pred_fallthru
        _
      %p1850 = scmp.le.s32.totalorder 2, %s30
      // Predicated region
      $region125: #{bert_sst2_forward.1} parent=5 // pred_check
        %p1851 = pneg %p1850
      $region126: #{bert_sst2_forward.1} parent=5 // pred_check_branch
        %1853 = sbr.rel (%p1851) target = $region128
      $region127: #{bert_sst2_forward.1} parent=5 // pred_region
        %s1854 = ssub.s32 %s30, 2
      $region128: #{bert_sst2_forward.1} parent=5 // pred_fallthru
        _
    $region6: #{bert_sst2_forward.1} parent=1 // loop_footer
      %s34 = sadd.s32 1, %s30
    $region7: #{bert_sst2_forward.1} parent=1 // loop_footer_branch
      %29 = sbr.rel target = $region3
    $region8: #{bert_sst2_forward.1} parent=1 // loop_exit
      _
    %1855 = vsyncpa [#allocation3], 1
    %s1856 = scalar_lea.sflag [#allocation3], 1
    %1857 = vsyncpa %s1856, 1
    %1858 = vsyncpa [#allocation5], 1

</llo_original>
